<compile_context>
chip_gen: v5e
topology: v5e:2x2
jax: 0.10.0
libtpu: 0.0.40
codegen_flags: <defaults>
</compile_context>

<pallas_src>
import functools

import jax
import jax.numpy as jnp
import numpy as np
from jax import lax
from jax.experimental import pallas as pl
from jax.experimental.pallas import tpu as pltpu

# ----------------------------- model hyper-params -----------------------------
ENC_VOCAB = 20          # layer_vocab_sizes[0]
DEC_VOCAB = 16          # layer_vocab_sizes[-1]  ("raw_output")
EMB_DIM = 32            # encoder embedding dim
DEC_EMB_DIM = 32        # decoder embedding dim
HIDDEN = 32             # num_hidden_dims (encoder & decoder)
MAX_INPUT_LEN = 8       # config.max_input_length == encoder seq len (required by the attention bmm)
MAX_OUTPUT_LEN = 100    # forward_e2e default
START_IDX = 1
STOP_IDX = 2
PAD_IDX = 0

GATE_COLS = 4 * HIDDEN                    # 128
CAT_COLS = GATE_COLS + MAX_INPUT_LEN      # 136: [ gates / comb (+pad) | attention ]


# ----------------------------- fused encoder + greedy decoder kernel -----------------------------
def fused_seq2seq_kernel(
        # encoder inputs
        enc_x_ref, wih0t_ref, whh0t_ref, b0_ref, wih1t_ref, whh1t_ref, b1_ref,
        # decoder inputs
        e_tab_ref, w_h_cat_ref, w_comb_a_t_ref, w_ih_t_ref, b_lstm_ref, w_out_t_ref, b_out_ref,
        # outputs
        tok_out_ref, enc_out_ref, h_out_ref, c_out_ref,
        # scratch
        xg_ref, y0_ref,
        *, hidden, seq_len, max_steps, start_idx, stop_idx):
    f32 = jnp.float32
    gc = 4 * hidden

    # ---------------- encoder: 2 stacked LSTM layers (state chained layer->layer) ----------------
    def lstm_sweep(whh_t, h0, c0, y_ref):
        def step(t, carry):
            h, c = carry
            gates = xg_ref[pl.ds(t, 1), :] + jnp.dot(h, whh_t, preferred_element_type=f32)
            i = jax.nn.sigmoid(gates[:, 0 * hidden:1 * hidden])
            f = jax.nn.sigmoid(gates[:, 1 * hidden:2 * hidden])
            g = jnp.tanh(gates[:, 2 * hidden:3 * hidden])
            o = jax.nn.sigmoid(gates[:, 3 * hidden:4 * hidden])
            c_new = f * c + i * g
            h_new = o * jnp.tanh(c_new)
            y_ref[pl.ds(t, 1), :] = h_new
            return h_new, c_new
        return lax.fori_loop(0, seq_len, step, (h0, c0), unroll=True)

    zero_h = jnp.zeros((1, hidden), f32)

    # layer 0: embeddings -> hidden, zero initial state; pre-activations staged in VMEM scratch
    xg_ref[...] = jnp.dot(enc_x_ref[...], wih0t_ref[...], preferred_element_type=f32) + b0_ref[...]
    h1, c1 = lstm_sweep(whh0t_ref[...], zero_h, zero_h, y0_ref)

    # layer 1: consumes layer-0 outputs, starts from layer-0 final state (as in MultitaskLSTMEncoder)
    xg_ref[...] = jnp.dot(y0_ref[...], wih1t_ref[...], preferred_element_type=f32) + b1_ref[...]
    h2, c2 = lstm_sweep(whh1t_ref[...], h1, c1, enc_out_ref)

    h_out_ref[...] = h2
    c_out_ref[...] = c2

    # ---------------- greedy attention decoder with early exit ----------------
    enc_out = enc_out_ref[...]          # (L_in, H)
    # fold attention_combine's attention half into the encoder outputs ONCE:
    #   attn_applied @ W_comb_a^T == attn_w @ (enc_out @ W_comb_a^T)
    enc_proj = jnp.dot(enc_out, w_comb_a_t_ref[...], preferred_element_type=f32)   # (L_in, H)

    w_h_cat = w_h_cat_ref[...]          # (H, 4H+L): [:, :4H]=W_hh^T, [:, 4H:]=W_attn_h^T
    w_ih_t = w_ih_t_ref[...]            # (H, 4H)
    b_lstm = b_lstm_ref[...]            # (1, 4H)
    w_out_t = w_out_t_ref[...]          # (H, V)
    b_out = b_out_ref[...]              # (1, V)

    def dec_cond(carry):
        t, tok, _, _ = carry
        return jnp.logical_and(t < max_steps, tok != stop_idx)

    def dec_body(carry):
        t, tok, h, c = carry

        # precomputed embedding projections: one dynamic VMEM row slice (no matmul)
        # e_row[:, :H]  = emb @ W_comb_e^T + b_comb ;  e_row[:, 4H:] = emb @ W_attn_e^T + b_attn
        e_row = e_tab_ref[pl.ds(tok, 1), :]                                     # (1, 4H+L)

        # operand-shared fused matmul on the recurrent state
        h_proj = jnp.dot(h, w_h_cat, preferred_element_type=f32)               # (1, 4H+L)

        # attention: softmax(Linear(cat(emb, h))) over the encoder positions
        attn_logits = e_row[:, gc:] + h_proj[:, gc:]                            # (1, L_in)
        m = jnp.max(attn_logits, axis=1, keepdims=True)
        ex = jnp.exp(attn_logits - m)
        attn_w = ex * pl.reciprocal(jnp.sum(ex, axis=1, keepdims=True), approx=True)

        # attention_combine + relu (attn half pre-folded into enc_proj)
        x = jax.nn.relu(e_row[:, :hidden]
                        + jnp.dot(attn_w, enc_proj, preferred_element_type=f32))  # (1, H)

        # LSTM cell (h @ W_hh^T is already inside h_proj)
        gates = jnp.dot(x, w_ih_t, preferred_element_type=f32) + h_proj[:, :gc] + b_lstm
        i_g = jax.nn.sigmoid(gates[:, 0 * hidden:1 * hidden])
        f_g = jax.nn.sigmoid(gates[:, 1 * hidden:2 * hidden])
        g_g = jnp.tanh(gates[:, 2 * hidden:3 * hidden])
        o_g = jax.nn.sigmoid(gates[:, 3 * hidden:4 * hidden])
        c_new = f_g * c + i_g * g_g
        h_new = o_g * jnp.tanh(c_new)

        # greedy token: argmax(logits) == argmax(log_softmax(logits))
        logits = jnp.dot(h_new, w_out_t, preferred_element_type=f32) + b_out    # (1, V)
        topi = jnp.argmax(logits, axis=1)[0].astype(jnp.int32)

        tok_out_ref[t] = topi                                                   # direct SMEM write
        return t + 1, topi, h_new, c_new

    carry0 = (jnp.int32(0), jnp.int32(start_idx), h2, c2)
    t_end, _, _, _ = lax.while_loop(dec_cond, dec_body, carry0)

    # zero the unwritten tail (matches torch.zeros(max_output_length) after the break)
    def zero_tail(i, carry):
        tok_out_ref[i] = jnp.int32(0)
        return carry
    lax.fori_loop(t_end, max_steps, zero_tail, jnp.int32(0))


# ----------------------------- parameters -----------------------------
def init_params(key):
    ks = jax.random.split(key, 32)
    s = 0.3
    p = {}
    # encoder embedding + stacked LSTMs
    p['enc_embedding'] = jax.random.normal(ks[0], (ENC_VOCAB, EMB_DIM)) * s
    p['enc_w_ih0'] = jax.random.normal(ks[1], (4 * HIDDEN, EMB_DIM)) * s
    p['enc_w_hh0'] = jax.random.normal(ks[2], (4 * HIDDEN, HIDDEN)) * s
    p['enc_b_ih0'] = jax.random.normal(ks[3], (4 * HIDDEN,)) * s
    p['enc_b_hh0'] = jax.random.normal(ks[4], (4 * HIDDEN,)) * s
    p['enc_w_ih1'] = jax.random.normal(ks[5], (4 * HIDDEN, HIDDEN)) * s
    p['enc_w_hh1'] = jax.random.normal(ks[6], (4 * HIDDEN, HIDDEN)) * s
    p['enc_b_ih1'] = jax.random.normal(ks[7], (4 * HIDDEN,)) * s
    p['enc_b_hh1'] = jax.random.normal(ks[8], (4 * HIDDEN,)) * s
    # final-layer ("raw_output") decoder -- the only one used by forward() / forward_e2e()
    dec_emb = jax.random.normal(ks[9], (DEC_VOCAB, DEC_EMB_DIM)) * s
    p['dec_embedding'] = dec_emb.at[PAD_IDX].set(0.0)           # padding_idx row = 0
    p['dec_w_attn'] = jax.random.normal(ks[10], (MAX_INPUT_LEN, DEC_EMB_DIM + HIDDEN)) * s
    p['dec_b_attn'] = jax.random.normal(ks[11], (MAX_INPUT_LEN,)) * s
    p['dec_w_comb'] = jax.random.normal(ks[12], (HIDDEN, DEC_EMB_DIM + HIDDEN)) * s
    p['dec_b_comb'] = jax.random.normal(ks[13], (HIDDEN,)) * s
    p['dec_w_ih'] = jax.random.normal(ks[14], (4 * HIDDEN, HIDDEN)) * s
    p['dec_w_hh'] = jax.random.normal(ks[15], (4 * HIDDEN, HIDDEN)) * s
    p['dec_b_ih'] = jax.random.normal(ks[16], (4 * HIDDEN,)) * s
    p['dec_b_hh'] = jax.random.normal(ks[17], (4 * HIDDEN,)) * s
    p['dec_w_out'] = jax.random.normal(ks[18], (DEC_VOCAB, HIDDEN)) * s
    p['dec_b_out'] = jax.random.normal(ks[19], (DEC_VOCAB,)) * s
    # TODO(synk): the unused "intermediate" task decoder (only needed by forward_multitask /
    # train_step, not by forward) is not materialised.
    return {k: v.astype(jnp.float32) for k, v in p.items()}


def prepare_params(p):
    """One-time weight prep: transposes, split/concat layouts, bias sums, precomputed embedding
    projections (done once, NOT per forward call)."""
    kp = {}
    kp['enc_embedding'] = p['enc_embedding']
    kp['wih0_t'] = p['enc_w_ih0'].T
    kp['whh0_t'] = p['enc_w_hh0'].T
    kp['b0'] = (p['enc_b_ih0'] + p['enc_b_hh0']).reshape(1, 4 * HIDDEN)
    kp['wih1_t'] = p['enc_w_ih1'].T
    kp['whh1_t'] = p['enc_w_hh1'].T
    kp['b1'] = (p['enc_b_ih1'] + p['enc_b_hh1']).reshape(1, 4 * HIDDEN)

    w_attn_e_t = p['dec_w_attn'][:, :DEC_EMB_DIM].T      # (De, L_in)
    w_attn_h_t = p['dec_w_attn'][:, DEC_EMB_DIM:].T      # (H,  L_in)
    w_comb_e_t = p['dec_w_comb'][:, :DEC_EMB_DIM].T      # (De, H)
    w_comb_a_t = p['dec_w_comb'][:, DEC_EMB_DIM:].T      # (H,  H)

    # precomputed per-token decoder-embedding projections (biases folded in):
    #   e_tab[v, :H]   = emb[v] @ W_comb_e^T + b_comb
    #   e_tab[v, 4H:]  = emb[v] @ W_attn_e^T + b_attn
    # attn block starts at lane 128 so the in-kernel slice is vreg-aligned.
    comb_e = p['dec_embedding'] @ w_comb_e_t + p['dec_b_comb'].reshape(1, HIDDEN)
    attn_e = p['dec_embedding'] @ w_attn_e_t + p['dec_b_attn'].reshape(1, MAX_INPUT_LEN)
    e_tab = jnp.zeros((DEC_VOCAB, CAT_COLS), jnp.float32)
    e_tab = e_tab.at[:, :HIDDEN].set(comb_e)
    e_tab = e_tab.at[:, GATE_COLS:].set(attn_e)
    kp['e_tab'] = e_tab

    # h-shared matmul: [:, :4H] = W_hh^T (gates), [:, 4H:] = W_attn_h^T
    kp['w_h_cat'] = jnp.concatenate([p['dec_w_hh'].T, w_attn_h_t], axis=1)    # (H, 4H+L)
    kp['w_comb_a_t'] = w_comb_a_t
    kp['w_ih_t'] = p['dec_w_ih'].T
    kp['b_lstm'] = (p['dec_b_ih'] + p['dec_b_hh']).reshape(1, 4 * HIDDEN)
    kp['w_out_t'] = p['dec_w_out'].T
    kp['b_out'] = p['dec_b_out'].reshape(1, DEC_VOCAB)
    return {k: v.astype(jnp.float32) for k, v in kp.items()}


# ----------------------------- wrapper (single fused pallas_call, under jit) -----------------------------
def _vmem_spec():
    return pl.BlockSpec(memory_space=pltpu.MemorySpace.VMEM)


@functools.partial(jax.jit, static_argnames=("max_output_length",))
def forward_e2e(enc_indices, kp, max_output_length=MAX_OUTPUT_LEN):
    embedded = jnp.take(kp['enc_embedding'], enc_indices, axis=0)       # (S, E) glue gather
    args = (embedded,
            kp['wih0_t'], kp['whh0_t'], kp['b0'],
            kp['wih1_t'], kp['whh1_t'], kp['b1'],
            kp['e_tab'], kp['w_h_cat'], kp['w_comb_a_t'],
            kp['w_ih_t'], kp['b_lstm'],
            kp['w_out_t'], kp['b_out'])
    out_shape = (jax.ShapeDtypeStruct((max_output_length,), jnp.int32),       # decoded tokens (SMEM)
                 jax.ShapeDtypeStruct((MAX_INPUT_LEN, HIDDEN), jnp.float32),  # encoder outputs
                 jax.ShapeDtypeStruct((1, HIDDEN), jnp.float32),              # final h
                 jax.ShapeDtypeStruct((1, HIDDEN), jnp.float32))              # final c
    kernel = functools.partial(fused_seq2seq_kernel,
                               hidden=HIDDEN, seq_len=MAX_INPUT_LEN,
                               max_steps=max_output_length,
                               start_idx=START_IDX, stop_idx=STOP_IDX)
    toks, enc_out, h, c = pl.pallas_call(
        kernel,
        out_shape=out_shape,
        in_specs=[_vmem_spec() for _ in args],
        out_specs=(pl.BlockSpec(memory_space=pltpu.MemorySpace.SMEM),
                   _vmem_spec(), _vmem_spec(), _vmem_spec()),
        scratch_shapes=[pltpu.VMEM((MAX_INPUT_LEN, 4 * HIDDEN), jnp.float32),   # staged x @ W_ih
                        pltpu.VMEM((MAX_INPUT_LEN, HIDDEN), jnp.float32)],      # layer-0 outputs
        compiler_params=pltpu.CompilerParams(vmem_limit_bytes=16 * 1024 * 1024),
    )(*args)
    # torch.zeros(max_output_length) holds float token ids
    return toks.astype(jnp.float32), (enc_out, h, c)


def forward(enc_indices, kp, max_output_length=MAX_OUTPUT_LEN):
    return forward_e2e(enc_indices, kp, max_output_length=max_output_length)[0]


# ----------------------------- pure-JAX references (sanity checks) -----------------------------
def _lstm_layer_ref(x_seq, w_ih, w_hh, b_ih, b_hh, h, c):
    H = w_hh.shape[1]
    ys = []
    for t in range(x_seq.shape[0]):
        gates = x_seq[t:t + 1] @ w_ih.T + b_ih + h @ w_hh.T + b_hh
        i = jax.nn.sigmoid(gates[:, :H])
        f = jax.nn.sigmoid(gates[:, H:2 * H])
        g = jnp.tanh(gates[:, 2 * H:3 * H])
        o = jax.nn.sigmoid(gates[:, 3 * H:])
        c = f * c + i * g
        h = o * jnp.tanh(c)
        ys.append(h)
    return jnp.concatenate(ys, axis=0), h, c


def encoder_ref(enc_indices, p):
    x = jnp.take(p['enc_embedding'], enc_indices, axis=0)
    z = jnp.zeros((1, HIDDEN), jnp.float32)
    y1, h1, c1 = _lstm_layer_ref(x, p['enc_w_ih0'], p['enc_w_hh0'],
                                 p['enc_b_ih0'], p['enc_b_hh0'], z, z)
    y2, h2, c2 = _lstm_layer_ref(y1, p['enc_w_ih1'], p['enc_w_hh1'],
                                 p['enc_b_ih1'], p['enc_b_hh1'], h1, c1)
    return y2, h2, c2


@jax.jit
def decoder_step_ref(tok, h, c, enc_out, p):
    """One un-fused LSTMDecWithAttention step with the ORIGINAL (untransformed) weights."""
    H = HIDDEN
    emb = jnp.take(p['dec_embedding'], tok, axis=0).reshape(1, -1)
    cat_eh = jnp.concatenate([emb, h], axis=1)
    attn_w = jax.nn.softmax(cat_eh @ p['dec_w_attn'].T + p['dec_b_attn'], axis=1)
    attn_applied = attn_w @ enc_out
    x = jax.nn.relu(jnp.concatenate([emb, attn_applied], axis=1) @ p['dec_w_comb'].T
                    + p['dec_b_comb'])
    gates = x @ p['dec_w_ih'].T + p['dec_b_ih'] + h @ p['dec_w_hh'].T + p['dec_b_hh']
    i = jax.nn.sigmoid(gates[:, :H])
    f = jax.nn.sigmoid(gates[:, H:2 * H])
    g = jnp.tanh(gates[:, 2 * H:3 * H])
    o = jax.nn.sigmoid(gates[:, 3 * H:])
    c_new = f * c + i * g
    h_new = o * jnp.tanh(c_new)
    logits = h_new @ p['dec_w_out'].T + p['dec_b_out']
    return logits, h_new, c_new


# ----------------------------- main -----------------------------
if __name__ == "__main__":
    root = jax.random.PRNGKey(0)
    k_params, k_inp = jax.random.split(root)
    params = init_params(k_params)
    kparams = prepare_params(params)      # one-time weight prep (transposes/splits/projection table)

    # enc_emb: length-MAX_INPUT_LEN vector of token indices (batch of 1, as in the module)
    enc_indices = jax.random.randint(k_inp, (MAX_INPUT_LEN,), 0, ENC_VOCAB, dtype=jnp.int32)

    dec_outputs, (enc_out, h_last, c_last) = forward_e2e(enc_indices, kparams,
                                                         max_output_length=MAX_OUTPUT_LEN)
    dec_outputs = jax.block_until_ready(dec_outputs)

    # sanity checks on the decoder output
    assert dec_outputs.shape == (MAX_OUTPUT_LEN,)
    assert dec_outputs.dtype == jnp.float32
    do = np.asarray(dec_outputs)
    assert np.all(np.isfinite(do))
    assert np.all((do >= 0) & (do < DEC_VOCAB))
    stop_pos = np.where(do == STOP_IDX)[0]
    if stop_pos.size > 0:                       # everything after the first stop token stays 0
        assert np.all(do[stop_pos[0] + 1:] == 0.0)

    # check the Pallas encoder against a pure-JAX reference (continuous values)
    y_ref, h_ref, c_ref = encoder_ref(enc_indices, params)
    np.testing.assert_allclose(np.asarray(enc_out), np.asarray(y_ref), atol=5e-3, rtol=5e-3)
    np.testing.assert_allclose(np.asarray(h_last), np.asarray(h_ref), atol=5e-3, rtol=5e-3)
    np.testing.assert_allclose(np.asarray(c_last), np.asarray(c_ref), atol=5e-3, rtol=5e-3)

    # check the Pallas greedy decode against an un-fused per-step reference, feeding the kernel's
    # own tokens back so trajectories stay synced; only assert on steps with a clear argmax margin
    # (approx reciprocal in the in-kernel softmax introduces ~1e-3-scale fp differences).
    n_check = int(stop_pos[0]) + 1 if stop_pos.size > 0 else MAX_OUTPUT_LEN
    tok = jnp.int32(START_IDX)
    h_r, c_r = h_last, c_last
    for t in range(n_check):
        logits, h_r, c_r = decoder_step_ref(tok, h_r, c_r, enc_out, params)
        lg = np.asarray(logits)[0]
        order = np.argsort(lg)[::-1]
        if lg[order[0]] - lg[order[1]] >= 2e-2:
            assert int(do[t]) == int(order[0]), f"decoder token mismatch at step {t}"
        tok = jnp.int32(int(do[t]))

    print("KERNEL_OK")
</pallas_src>

<mosaic_0001>
module attributes {stable_mosaic.version = 11 : i64} {
  func.func @fused_seq2seq_kernel(%arg0: memref<8x32xf32, #tpu.memory_space<vmem>>, %arg1: memref<32x128xf32, #tpu.memory_space<vmem>>, %arg2: memref<32x128xf32, #tpu.memory_space<vmem>>, %arg3: memref<1x128xf32, #tpu.memory_space<vmem>>, %arg4: memref<32x128xf32, #tpu.memory_space<vmem>>, %arg5: memref<32x128xf32, #tpu.memory_space<vmem>>, %arg6: memref<1x128xf32, #tpu.memory_space<vmem>>, %arg7: memref<16x136xf32, #tpu.memory_space<vmem>>, %arg8: memref<32x136xf32, #tpu.memory_space<vmem>>, %arg9: memref<32x32xf32, #tpu.memory_space<vmem>>, %arg10: memref<32x128xf32, #tpu.memory_space<vmem>>, %arg11: memref<1x128xf32, #tpu.memory_space<vmem>>, %arg12: memref<32x16xf32, #tpu.memory_space<vmem>>, %arg13: memref<1x16xf32, #tpu.memory_space<vmem>>, %arg14: memref<100xi32, #tpu.memory_space<smem>>, %arg15: memref<8x32xf32, #tpu.memory_space<vmem>>, %arg16: memref<1x32xf32, #tpu.memory_space<vmem>>, %arg17: memref<1x32xf32, #tpu.memory_space<vmem>>, %arg18: memref<8x128xf32, #tpu.memory_space<vmem>>, %arg19: memref<8x32xf32, #tpu.memory_space<vmem>>) attributes {dimension_semantics = [], scalar_prefetch = 0 : i64, scratch_operands = 2 : i64, tpu.core_type = #tpu.core_type<tc>} {
    %cst = arith.constant 0.000000e+00 : f32
    %0 = vector.broadcast %cst : f32 to vector<1x32xf32>
    %c0 = arith.constant 0 : index
    %c0_0 = arith.constant 0 : index
    %1 = vector.load %arg0[%c0, %c0_0] : memref<8x32xf32, #tpu.memory_space<vmem>>, vector<8x32xf32>
    %c0_1 = arith.constant 0 : index
    %c0_2 = arith.constant 0 : index
    %2 = vector.load %arg1[%c0_1, %c0_2] : memref<32x128xf32, #tpu.memory_space<vmem>>, vector<32x128xf32>
    %cst_3 = arith.constant dense<0.000000e+00> : vector<8x128xf32>
    %3 = tpu.matmul %1, %2, %cst_3 {dimension_numbers = #tpu.dot_dimension_numbers<[1], [0], [0], [1], [0, 0, 1, 1], [], []>} : vector<8x32xf32>, vector<32x128xf32>, vector<8x128xf32> -> vector<8x128xf32>
    %c0_4 = arith.constant 0 : index
    %c0_5 = arith.constant 0 : index
    %4 = vector.load %arg3[%c0_4, %c0_5] : memref<1x128xf32, #tpu.memory_space<vmem>>, vector<1x128xf32>
    %5 = vector.broadcast %4 : vector<1x128xf32> to vector<8x128xf32>
    %6 = arith.addf %3, %5 : vector<8x128xf32>
    %c0_6 = arith.constant 0 : index
    %c0_7 = arith.constant 0 : index
    %7 = vector.load %arg18[%c0_6, %c0_7] : memref<8x128xf32, #tpu.memory_space<vmem>>, vector<8x128xf32>
    tpu.vector_store %arg18[%c0_6, %c0_7], %6 {strides = array<i32>} : memref<8x128xf32, #tpu.memory_space<vmem>>, vector<8x128xf32>,
    %c0_8 = arith.constant 0 : index
    %c0_9 = arith.constant 0 : index
    %8 = vector.load %arg2[%c0_8, %c0_9] : memref<32x128xf32, #tpu.memory_space<vmem>>, vector<32x128xf32>
    %c0_i32 = arith.constant 0 : i32
    %9 = arith.index_cast %c0_i32 : i32 to index
    %c0_10 = arith.constant 0 : index
    %10 = vector.load %arg18[%9, %c0_10] : memref<8x128xf32, #tpu.memory_space<vmem>>, vector<1x128xf32>
    %cst_11 = arith.constant dense<0.000000e+00> : vector<1x128xf32>
    %11 = tpu.matmul %0, %8, %cst_11 {dimension_numbers = #tpu.dot_dimension_numbers<[1], [0], [0], [1], [0, 0, 1, 1], [], []>} : vector<1x32xf32>, vector<32x128xf32>, vector<1x128xf32> -> vector<1x128xf32>
    %12 = arith.addf %10, %11 : vector<1x128xf32>
    %13 = vector.extract_strided_slice %12 {offsets = [0, 0], sizes = [1, 32], strides = [1, 1]} : vector<1x128xf32> to vector<1x32xf32>
    %14 = arith.negf %13 : vector<1x32xf32>
    %15 = math.exp %14 : vector<1x32xf32>
    %cst_12 = arith.constant 1.000000e+00 : f32
    %16 = vector.broadcast %cst_12 : f32 to vector<1x32xf32>
    %17 = arith.addf %16, %15 : vector<1x32xf32>
    %18 = arith.divf %16, %17 : vector<1x32xf32>
    %19 = vector.extract_strided_slice %12 {offsets = [0, 32], sizes = [1, 32], strides = [1, 1]} : vector<1x128xf32> to vector<1x32xf32>
    %20 = arith.negf %19 : vector<1x32xf32>
    %21 = math.exp %20 : vector<1x32xf32>
    %cst_13 = arith.constant 1.000000e+00 : f32
    %22 = vector.broadcast %cst_13 : f32 to vector<1x32xf32>
    %23 = arith.addf %22, %21 : vector<1x32xf32>
    %24 = arith.divf %22, %23 : vector<1x32xf32>
    %25 = vector.extract_strided_slice %12 {offsets = [0, 64], sizes = [1, 32], strides = [1, 1]} : vector<1x128xf32> to vector<1x32xf32>
    %26 = math.tanh %25 : vector<1x32xf32>
    %27 = vector.extract_strided_slice %12 {offsets = [0, 96], sizes = [1, 32], strides = [1, 1]} : vector<1x128xf32> to vector<1x32xf32>
    %28 = arith.negf %27 : vector<1x32xf32>
    %29 = math.exp %28 : vector<1x32xf32>
    %cst_14 = arith.constant 1.000000e+00 : f32
    %30 = vector.broadcast %cst_14 : f32 to vector<1x32xf32>
    %31 = arith.addf %30, %29 : vector<1x32xf32>
    %32 = arith.divf %30, %31 : vector<1x32xf32>
    %33 = arith.mulf %24, %0 : vector<1x32xf32>
    %34 = arith.mulf %18, %26 : vector<1x32xf32>
    %35 = arith.addf %33, %34 : vector<1x32xf32>
    %36 = math.tanh %35 : vector<1x32xf32>
    %37 = arith.mulf %32, %36 : vector<1x32xf32>
    %38 = arith.index_cast %c0_i32 : i32 to index
    %c0_15 = arith.constant 0 : index
    %39 = vector.load %arg19[%38, %c0_15] : memref<8x32xf32, #tpu.memory_space<vmem>>, vector<1x32xf32>
    tpu.vector_store %arg19[%38, %c0_15], %37 {strides = array<i32>} : memref<8x32xf32, #tpu.memory_space<vmem>>, vector<1x32xf32>,
    %c1_i32 = arith.constant 1 : i32
    %40 = arith.index_cast %c1_i32 : i32 to index
    %c0_16 = arith.constant 0 : index
    %41 = vector.load %arg18[%40, %c0_16] : memref<8x128xf32, #tpu.memory_space<vmem>>, vector<1x128xf32>
    %cst_17 = arith.constant dense<0.000000e+00> : vector<1x128xf32>
    %42 = tpu.matmul %37, %8, %cst_17 {dimension_numbers = #tpu.dot_dimension_numbers<[1], [0], [0], [1], [0, 0, 1, 1], [], []>} : vector<1x32xf32>, vector<32x128xf32>, vector<1x128xf32> -> vector<1x128xf32>
    %43 = arith.addf %41, %42 : vector<1x128xf32>
    %44 = vector.extract_strided_slice %43 {offsets = [0, 0], sizes = [1, 32], strides = [1, 1]} : vector<1x128xf32> to vector<1x32xf32>
    %45 = arith.negf %44 : vector<1x32xf32>
    %46 = math.exp %45 : vector<1x32xf32>
    %cst_18 = arith.constant 1.000000e+00 : f32
    %47 = vector.broadcast %cst_18 : f32 to vector<1x32xf32>
    %48 = arith.addf %47, %46 : vector<1x32xf32>
    %49 = arith.divf %47, %48 : vector<1x32xf32>
    %50 = vector.extract_strided_slice %43 {offsets = [0, 32], sizes = [1, 32], strides = [1, 1]} : vector<1x128xf32> to vector<1x32xf32>
    %51 = arith.negf %50 : vector<1x32xf32>
    %52 = math.exp %51 : vector<1x32xf32>
    %cst_19 = arith.constant 1.000000e+00 : f32
    %53 = vector.broadcast %cst_19 : f32 to vector<1x32xf32>
    %54 = arith.addf %53, %52 : vector<1x32xf32>
    %55 = arith.divf %53, %54 : vector<1x32xf32>
    %56 = vector.extract_strided_slice %43 {offsets = [0, 64], sizes = [1, 32], strides = [1, 1]} : vector<1x128xf32> to vector<1x32xf32>
    %57 = math.tanh %56 : vector<1x32xf32>
    %58 = vector.extract_strided_slice %43 {offsets = [0, 96], sizes = [1, 32], strides = [1, 1]} : vector<1x128xf32> to vector<1x32xf32>
    %59 = arith.negf %58 : vector<1x32xf32>
    %60 = math.exp %59 : vector<1x32xf32>
    %cst_20 = arith.constant 1.000000e+00 : f32
    %61 = vector.broadcast %cst_20 : f32 to vector<1x32xf32>
    %62 = arith.addf %61, %60 : vector<1x32xf32>
    %63 = arith.divf %61, %62 : vector<1x32xf32>
    %64 = arith.mulf %55, %35 : vector<1x32xf32>
    %65 = arith.mulf %49, %57 : vector<1x32xf32>
    %66 = arith.addf %64, %65 : vector<1x32xf32>
    %67 = math.tanh %66 : vector<1x32xf32>
    %68 = arith.mulf %63, %67 : vector<1x32xf32>
    %69 = arith.index_cast %c1_i32 : i32 to index
    %c0_21 = arith.constant 0 : index
    %70 = vector.load %arg19[%69, %c0_21] : memref<8x32xf32, #tpu.memory_space<vmem>>, vector<1x32xf32>
    tpu.vector_store %arg19[%69, %c0_21], %68 {strides = array<i32>} : memref<8x32xf32, #tpu.memory_space<vmem>>, vector<1x32xf32>,
    %c2_i32 = arith.constant 2 : i32
    %71 = arith.index_cast %c2_i32 : i32 to index
    %c0_22 = arith.constant 0 : index
    %72 = vector.load %arg18[%71, %c0_22] : memref<8x128xf32, #tpu.memory_space<vmem>>, vector<1x128xf32>
    %cst_23 = arith.constant dense<0.000000e+00> : vector<1x128xf32>
    %73 = tpu.matmul %68, %8, %cst_23 {dimension_numbers = #tpu.dot_dimension_numbers<[1], [0], [0], [1], [0, 0, 1, 1], [], []>} : vector<1x32xf32>, vector<32x128xf32>, vector<1x128xf32> -> vector<1x128xf32>
    %74 = arith.addf %72, %73 : vector<1x128xf32>
    %75 = vector.extract_strided_slice %74 {offsets = [0, 0], sizes = [1, 32], strides = [1, 1]} : vector<1x128xf32> to vector<1x32xf32>
    %76 = arith.negf %75 : vector<1x32xf32>
    %77 = math.exp %76 : vector<1x32xf32>
    %cst_24 = arith.constant 1.000000e+00 : f32
    %78 = vector.broadcast %cst_24 : f32 to vector<1x32xf32>
    %79 = arith.addf %78, %77 : vector<1x32xf32>
    %80 = arith.divf %78, %79 : vector<1x32xf32>
    %81 = vector.extract_strided_slice %74 {offsets = [0, 32], sizes = [1, 32], strides = [1, 1]} : vector<1x128xf32> to vector<1x32xf32>
    %82 = arith.negf %81 : vector<1x32xf32>
    %83 = math.exp %82 : vector<1x32xf32>
    %cst_25 = arith.constant 1.000000e+00 : f32
    %84 = vector.broadcast %cst_25 : f32 to vector<1x32xf32>
    %85 = arith.addf %84, %83 : vector<1x32xf32>
    %86 = arith.divf %84, %85 : vector<1x32xf32>
    %87 = vector.extract_strided_slice %74 {offsets = [0, 64], sizes = [1, 32], strides = [1, 1]} : vector<1x128xf32> to vector<1x32xf32>
    %88 = math.tanh %87 : vector<1x32xf32>
    %89 = vector.extract_strided_slice %74 {offsets = [0, 96], sizes = [1, 32], strides = [1, 1]} : vector<1x128xf32> to vector<1x32xf32>
    %90 = arith.negf %89 : vector<1x32xf32>
    %91 = math.exp %90 : vector<1x32xf32>
    %cst_26 = arith.constant 1.000000e+00 : f32
    %92 = vector.broadcast %cst_26 : f32 to vector<1x32xf32>
    %93 = arith.addf %92, %91 : vector<1x32xf32>
    %94 = arith.divf %92, %93 : vector<1x32xf32>
    %95 = arith.mulf %86, %66 : vector<1x32xf32>
    %96 = arith.mulf %80, %88 : vector<1x32xf32>
    %97 = arith.addf %95, %96 : vector<1x32xf32>
    %98 = math.tanh %97 : vector<1x32xf32>
    %99 = arith.mulf %94, %98 : vector<1x32xf32>
    %100 = arith.index_cast %c2_i32 : i32 to index
    %c0_27 = arith.constant 0 : index
    %101 = vector.load %arg19[%100, %c0_27] : memref<8x32xf32, #tpu.memory_space<vmem>>, vector<1x32xf32>
    tpu.vector_store %arg19[%100, %c0_27], %99 {strides = array<i32>} : memref<8x32xf32, #tpu.memory_space<vmem>>, vector<1x32xf32>,
    %c3_i32 = arith.constant 3 : i32
    %102 = arith.index_cast %c3_i32 : i32 to index
    %c0_28 = arith.constant 0 : index
    %103 = vector.load %arg18[%102, %c0_28] : memref<8x128xf32, #tpu.memory_space<vmem>>, vector<1x128xf32>
    %cst_29 = arith.constant dense<0.000000e+00> : vector<1x128xf32>
    %104 = tpu.matmul %99, %8, %cst_29 {dimension_numbers = #tpu.dot_dimension_numbers<[1], [0], [0], [1], [0, 0, 1, 1], [], []>} : vector<1x32xf32>, vector<32x128xf32>, vector<1x128xf32> -> vector<1x128xf32>
    %105 = arith.addf %103, %104 : vector<1x128xf32>
    %106 = vector.extract_strided_slice %105 {offsets = [0, 0], sizes = [1, 32], strides = [1, 1]} : vector<1x128xf32> to vector<1x32xf32>
    %107 = arith.negf %106 : vector<1x32xf32>
    %108 = math.exp %107 : vector<1x32xf32>
    %cst_30 = arith.constant 1.000000e+00 : f32
    %109 = vector.broadcast %cst_30 : f32 to vector<1x32xf32>
    %110 = arith.addf %109, %108 : vector<1x32xf32>
    %111 = arith.divf %109, %110 : vector<1x32xf32>
    %112 = vector.extract_strided_slice %105 {offsets = [0, 32], sizes = [1, 32], strides = [1, 1]} : vector<1x128xf32> to vector<1x32xf32>
    %113 = arith.negf %112 : vector<1x32xf32>
    %114 = math.exp %113 : vector<1x32xf32>
    %cst_31 = arith.constant 1.000000e+00 : f32
    %115 = vector.broadcast %cst_31 : f32 to vector<1x32xf32>
    %116 = arith.addf %115, %114 : vector<1x32xf32>
    %117 = arith.divf %115, %116 : vector<1x32xf32>
    %118 = vector.extract_strided_slice %105 {offsets = [0, 64], sizes = [1, 32], strides = [1, 1]} : vector<1x128xf32> to vector<1x32xf32>
    %119 = math.tanh %118 : vector<1x32xf32>
    %120 = vector.extract_strided_slice %105 {offsets = [0, 96], sizes = [1, 32], strides = [1, 1]} : vector<1x128xf32> to vector<1x32xf32>
    %121 = arith.negf %120 : vector<1x32xf32>
    %122 = math.exp %121 : vector<1x32xf32>
    %cst_32 = arith.constant 1.000000e+00 : f32
    %123 = vector.broadcast %cst_32 : f32 to vector<1x32xf32>
    %124 = arith.addf %123, %122 : vector<1x32xf32>
    %125 = arith.divf %123, %124 : vector<1x32xf32>
    %126 = arith.mulf %117, %97 : vector<1x32xf32>
    %127 = arith.mulf %111, %119 : vector<1x32xf32>
    %128 = arith.addf %126, %127 : vector<1x32xf32>
    %129 = math.tanh %128 : vector<1x32xf32>
    %130 = arith.mulf %125, %129 : vector<1x32xf32>
    %131 = arith.index_cast %c3_i32 : i32 to index
    %c0_33 = arith.constant 0 : index
    %132 = vector.load %arg19[%131, %c0_33] : memref<8x32xf32, #tpu.memory_space<vmem>>, vector<1x32xf32>
    tpu.vector_store %arg19[%131, %c0_33], %130 {strides = array<i32>} : memref<8x32xf32, #tpu.memory_space<vmem>>, vector<1x32xf32>,
    %c4_i32 = arith.constant 4 : i32
    %133 = arith.index_cast %c4_i32 : i32 to index
    %c0_34 = arith.constant 0 : index
    %134 = vector.load %arg18[%133, %c0_34] : memref<8x128xf32, #tpu.memory_space<vmem>>, vector<1x128xf32>
    %cst_35 = arith.constant dense<0.000000e+00> : vector<1x128xf32>
    %135 = tpu.matmul %130, %8, %cst_35 {dimension_numbers = #tpu.dot_dimension_numbers<[1], [0], [0], [1], [0, 0, 1, 1], [], []>} : vector<1x32xf32>, vector<32x128xf32>, vector<1x128xf32> -> vector<1x128xf32>
    %136 = arith.addf %134, %135 : vector<1x128xf32>
    %137 = vector.extract_strided_slice %136 {offsets = [0, 0], sizes = [1, 32], strides = [1, 1]} : vector<1x128xf32> to vector<1x32xf32>
    %138 = arith.negf %137 : vector<1x32xf32>
    %139 = math.exp %138 : vector<1x32xf32>
    %cst_36 = arith.constant 1.000000e+00 : f32
    %140 = vector.broadcast %cst_36 : f32 to vector<1x32xf32>
    %141 = arith.addf %140, %139 : vector<1x32xf32>
    %142 = arith.divf %140, %141 : vector<1x32xf32>
    %143 = vector.extract_strided_slice %136 {offsets = [0, 32], sizes = [1, 32], strides = [1, 1]} : vector<1x128xf32> to vector<1x32xf32>
    %144 = arith.negf %143 : vector<1x32xf32>
    %145 = math.exp %144 : vector<1x32xf32>
    %cst_37 = arith.constant 1.000000e+00 : f32
    %146 = vector.broadcast %cst_37 : f32 to vector<1x32xf32>
    %147 = arith.addf %146, %145 : vector<1x32xf32>
    %148 = arith.divf %146, %147 : vector<1x32xf32>
    %149 = vector.extract_strided_slice %136 {offsets = [0, 64], sizes = [1, 32], strides = [1, 1]} : vector<1x128xf32> to vector<1x32xf32>
    %150 = math.tanh %149 : vector<1x32xf32>
    %151 = vector.extract_strided_slice %136 {offsets = [0, 96], sizes = [1, 32], strides = [1, 1]} : vector<1x128xf32> to vector<1x32xf32>
    %152 = arith.negf %151 : vector<1x32xf32>
    %153 = math.exp %152 : vector<1x32xf32>
    %cst_38 = arith.constant 1.000000e+00 : f32
    %154 = vector.broadcast %cst_38 : f32 to vector<1x32xf32>
    %155 = arith.addf %154, %153 : vector<1x32xf32>
    %156 = arith.divf %154, %155 : vector<1x32xf32>
    %157 = arith.mulf %148, %128 : vector<1x32xf32>
    %158 = arith.mulf %142, %150 : vector<1x32xf32>
    %159 = arith.addf %157, %158 : vector<1x32xf32>
    %160 = math.tanh %159 : vector<1x32xf32>
    %161 = arith.mulf %156, %160 : vector<1x32xf32>
    %162 = arith.index_cast %c4_i32 : i32 to index
    %c0_39 = arith.constant 0 : index
    %163 = vector.load %arg19[%162, %c0_39] : memref<8x32xf32, #tpu.memory_space<vmem>>, vector<1x32xf32>
    tpu.vector_store %arg19[%162, %c0_39], %161 {strides = array<i32>} : memref<8x32xf32, #tpu.memory_space<vmem>>, vector<1x32xf32>,
    %c5_i32 = arith.constant 5 : i32
    %164 = arith.index_cast %c5_i32 : i32 to index
    %c0_40 = arith.constant 0 : index
    %165 = vector.load %arg18[%164, %c0_40] : memref<8x128xf32, #tpu.memory_space<vmem>>, vector<1x128xf32>
    %cst_41 = arith.constant dense<0.000000e+00> : vector<1x128xf32>
    %166 = tpu.matmul %161, %8, %cst_41 {dimension_numbers = #tpu.dot_dimension_numbers<[1], [0], [0], [1], [0, 0, 1, 1], [], []>} : vector<1x32xf32>, vector<32x128xf32>, vector<1x128xf32> -> vector<1x128xf32>
    %167 = arith.addf %165, %166 : vector<1x128xf32>
    %168 = vector.extract_strided_slice %167 {offsets = [0, 0], sizes = [1, 32], strides = [1, 1]} : vector<1x128xf32> to vector<1x32xf32>
    %169 = arith.negf %168 : vector<1x32xf32>
    %170 = math.exp %169 : vector<1x32xf32>
    %cst_42 = arith.constant 1.000000e+00 : f32
    %171 = vector.broadcast %cst_42 : f32 to vector<1x32xf32>
    %172 = arith.addf %171, %170 : vector<1x32xf32>
    %173 = arith.divf %171, %172 : vector<1x32xf32>
    %174 = vector.extract_strided_slice %167 {offsets = [0, 32], sizes = [1, 32], strides = [1, 1]} : vector<1x128xf32> to vector<1x32xf32>
    %175 = arith.negf %174 : vector<1x32xf32>
    %176 = math.exp %175 : vector<1x32xf32>
    %cst_43 = arith.constant 1.000000e+00 : f32
    %177 = vector.broadcast %cst_43 : f32 to vector<1x32xf32>
    %178 = arith.addf %177, %176 : vector<1x32xf32>
    %179 = arith.divf %177, %178 : vector<1x32xf32>
    %180 = vector.extract_strided_slice %167 {offsets = [0, 64], sizes = [1, 32], strides = [1, 1]} : vector<1x128xf32> to vector<1x32xf32>
    %181 = math.tanh %180 : vector<1x32xf32>
    %182 = vector.extract_strided_slice %167 {offsets = [0, 96], sizes = [1, 32], strides = [1, 1]} : vector<1x128xf32> to vector<1x32xf32>
    %183 = arith.negf %182 : vector<1x32xf32>
    %184 = math.exp %183 : vector<1x32xf32>
    %cst_44 = arith.constant 1.000000e+00 : f32
    %185 = vector.broadcast %cst_44 : f32 to vector<1x32xf32>
    %186 = arith.addf %185, %184 : vector<1x32xf32>
    %187 = arith.divf %185, %186 : vector<1x32xf32>
    %188 = arith.mulf %179, %159 : vector<1x32xf32>
    %189 = arith.mulf %173, %181 : vector<1x32xf32>
    %190 = arith.addf %188, %189 : vector<1x32xf32>
    %191 = math.tanh %190 : vector<1x32xf32>
    %192 = arith.mulf %187, %191 : vector<1x32xf32>
    %193 = arith.index_cast %c5_i32 : i32 to index
    %c0_45 = arith.constant 0 : index
    %194 = vector.load %arg19[%193, %c0_45] : memref<8x32xf32, #tpu.memory_space<vmem>>, vector<1x32xf32>
    tpu.vector_store %arg19[%193, %c0_45], %192 {strides = array<i32>} : memref<8x32xf32, #tpu.memory_space<vmem>>, vector<1x32xf32>,
    %c6_i32 = arith.constant 6 : i32
    %195 = arith.index_cast %c6_i32 : i32 to index
    %c0_46 = arith.constant 0 : index
    %196 = vector.load %arg18[%195, %c0_46] : memref<8x128xf32, #tpu.memory_space<vmem>>, vector<1x128xf32>
    %cst_47 = arith.constant dense<0.000000e+00> : vector<1x128xf32>
    %197 = tpu.matmul %192, %8, %cst_47 {dimension_numbers = #tpu.dot_dimension_numbers<[1], [0], [0], [1], [0, 0, 1, 1], [], []>} : vector<1x32xf32>, vector<32x128xf32>, vector<1x128xf32> -> vector<1x128xf32>
    %198 = arith.addf %196, %197 : vector<1x128xf32>
    %199 = vector.extract_strided_slice %198 {offsets = [0, 0], sizes = [1, 32], strides = [1, 1]} : vector<1x128xf32> to vector<1x32xf32>
    %200 = arith.negf %199 : vector<1x32xf32>
    %201 = math.exp %200 : vector<1x32xf32>
    %cst_48 = arith.constant 1.000000e+00 : f32
    %202 = vector.broadcast %cst_48 : f32 to vector<1x32xf32>
    %203 = arith.addf %202, %201 : vector<1x32xf32>
    %204 = arith.divf %202, %203 : vector<1x32xf32>
    %205 = vector.extract_strided_slice %198 {offsets = [0, 32], sizes = [1, 32], strides = [1, 1]} : vector<1x128xf32> to vector<1x32xf32>
    %206 = arith.negf %205 : vector<1x32xf32>
    %207 = math.exp %206 : vector<1x32xf32>
    %cst_49 = arith.constant 1.000000e+00 : f32
    %208 = vector.broadcast %cst_49 : f32 to vector<1x32xf32>
    %209 = arith.addf %208, %207 : vector<1x32xf32>
    %210 = arith.divf %208, %209 : vector<1x32xf32>
    %211 = vector.extract_strided_slice %198 {offsets = [0, 64], sizes = [1, 32], strides = [1, 1]} : vector<1x128xf32> to vector<1x32xf32>
    %212 = math.tanh %211 : vector<1x32xf32>
    %213 = vector.extract_strided_slice %198 {offsets = [0, 96], sizes = [1, 32], strides = [1, 1]} : vector<1x128xf32> to vector<1x32xf32>
    %214 = arith.negf %213 : vector<1x32xf32>
    %215 = math.exp %214 : vector<1x32xf32>
    %cst_50 = arith.constant 1.000000e+00 : f32
    %216 = vector.broadcast %cst_50 : f32 to vector<1x32xf32>
    %217 = arith.addf %216, %215 : vector<1x32xf32>
    %218 = arith.divf %216, %217 : vector<1x32xf32>
    %219 = arith.mulf %210, %190 : vector<1x32xf32>
    %220 = arith.mulf %204, %212 : vector<1x32xf32>
    %221 = arith.addf %219, %220 : vector<1x32xf32>
    %222 = math.tanh %221 : vector<1x32xf32>
    %223 = arith.mulf %218, %222 : vector<1x32xf32>
    %224 = arith.index_cast %c6_i32 : i32 to index
    %c0_51 = arith.constant 0 : index
    %225 = vector.load %arg19[%224, %c0_51] : memref<8x32xf32, #tpu.memory_space<vmem>>, vector<1x32xf32>
    tpu.vector_store %arg19[%224, %c0_51], %223 {strides = array<i32>} : memref<8x32xf32, #tpu.memory_space<vmem>>, vector<1x32xf32>,
    %c7_i32 = arith.constant 7 : i32
    %226 = arith.index_cast %c7_i32 : i32 to index
    %c0_52 = arith.constant 0 : index
    %227 = vector.load %arg18[%226, %c0_52] : memref<8x128xf32, #tpu.memory_space<vmem>>, vector<1x128xf32>
    %cst_53 = arith.constant dense<0.000000e+00> : vector<1x128xf32>
    %228 = tpu.matmul %223, %8, %cst_53 {dimension_numbers = #tpu.dot_dimension_numbers<[1], [0], [0], [1], [0, 0, 1, 1], [], []>} : vector<1x32xf32>, vector<32x128xf32>, vector<1x128xf32> -> vector<1x128xf32>
    %229 = arith.addf %227, %228 : vector<1x128xf32>
    %230 = vector.extract_strided_slice %229 {offsets = [0, 0], sizes = [1, 32], strides = [1, 1]} : vector<1x128xf32> to vector<1x32xf32>
    %231 = arith.negf %230 : vector<1x32xf32>
    %232 = math.exp %231 : vector<1x32xf32>
    %cst_54 = arith.constant 1.000000e+00 : f32
    %233 = vector.broadcast %cst_54 : f32 to vector<1x32xf32>
    %234 = arith.addf %233, %232 : vector<1x32xf32>
    %235 = arith.divf %233, %234 : vector<1x32xf32>
    %236 = vector.extract_strided_slice %229 {offsets = [0, 32], sizes = [1, 32], strides = [1, 1]} : vector<1x128xf32> to vector<1x32xf32>
    %237 = arith.negf %236 : vector<1x32xf32>
    %238 = math.exp %237 : vector<1x32xf32>
    %cst_55 = arith.constant 1.000000e+00 : f32
    %239 = vector.broadcast %cst_55 : f32 to vector<1x32xf32>
    %240 = arith.addf %239, %238 : vector<1x32xf32>
    %241 = arith.divf %239, %240 : vector<1x32xf32>
    %242 = vector.extract_strided_slice %229 {offsets = [0, 64], sizes = [1, 32], strides = [1, 1]} : vector<1x128xf32> to vector<1x32xf32>
    %243 = math.tanh %242 : vector<1x32xf32>
    %244 = vector.extract_strided_slice %229 {offsets = [0, 96], sizes = [1, 32], strides = [1, 1]} : vector<1x128xf32> to vector<1x32xf32>
    %245 = arith.negf %244 : vector<1x32xf32>
    %246 = math.exp %245 : vector<1x32xf32>
    %cst_56 = arith.constant 1.000000e+00 : f32
    %247 = vector.broadcast %cst_56 : f32 to vector<1x32xf32>
    %248 = arith.addf %247, %246 : vector<1x32xf32>
    %249 = arith.divf %247, %248 : vector<1x32xf32>
    %250 = arith.mulf %241, %221 : vector<1x32xf32>
    %251 = arith.mulf %235, %243 : vector<1x32xf32>
    %252 = arith.addf %250, %251 : vector<1x32xf32>
    %253 = math.tanh %252 : vector<1x32xf32>
    %254 = arith.mulf %249, %253 : vector<1x32xf32>
    %255 = arith.index_cast %c7_i32 : i32 to index
    %c0_57 = arith.constant 0 : index
    %256 = vector.load %arg19[%255, %c0_57] : memref<8x32xf32, #tpu.memory_space<vmem>>, vector<1x32xf32>
    tpu.vector_store %arg19[%255, %c0_57], %254 {strides = array<i32>} : memref<8x32xf32, #tpu.memory_space<vmem>>, vector<1x32xf32>,
    %c8_i32 = arith.constant 8 : i32
    %c0_58 = arith.constant 0 : index
    %c0_59 = arith.constant 0 : index
    %257 = vector.load %arg19[%c0_58, %c0_59] : memref<8x32xf32, #tpu.memory_space<vmem>>, vector<8x32xf32>
    %c0_60 = arith.constant 0 : index
    %c0_61 = arith.constant 0 : index
    %258 = vector.load %arg4[%c0_60, %c0_61] : memref<32x128xf32, #tpu.memory_space<vmem>>, vector<32x128xf32>
    %cst_62 = arith.constant dense<0.000000e+00> : vector<8x128xf32>
    %259 = tpu.matmul %257, %258, %cst_62 {dimension_numbers = #tpu.dot_dimension_numbers<[1], [0], [0], [1], [0, 0, 1, 1], [], []>} : vector<8x32xf32>, vector<32x128xf32>, vector<8x128xf32> -> vector<8x128xf32>
    %c0_63 = arith.constant 0 : index
    %c0_64 = arith.constant 0 : index
    %260 = vector.load %arg6[%c0_63, %c0_64] : memref<1x128xf32, #tpu.memory_space<vmem>>, vector<1x128xf32>
    %261 = vector.broadcast %260 : vector<1x128xf32> to vector<8x128xf32>
    %262 = arith.addf %259, %261 : vector<8x128xf32>
    %c0_65 = arith.constant 0 : index
    %c0_66 = arith.constant 0 : index
    %263 = vector.load %arg18[%c0_65, %c0_66] : memref<8x128xf32, #tpu.memory_space<vmem>>, vector<8x128xf32>
    tpu.vector_store %arg18[%c0_65, %c0_66], %262 {strides = array<i32>} : memref<8x128xf32, #tpu.memory_space<vmem>>, vector<8x128xf32>,
    %c0_67 = arith.constant 0 : index
    %c0_68 = arith.constant 0 : index
    %264 = vector.load %arg5[%c0_67, %c0_68] : memref<32x128xf32, #tpu.memory_space<vmem>>, vector<32x128xf32>
    %c0_i32_69 = arith.constant 0 : i32
    %265 = arith.index_cast %c0_i32_69 : i32 to index
    %c0_70 = arith.constant 0 : index
    %266 = vector.load %arg18[%265, %c0_70] : memref<8x128xf32, #tpu.memory_space<vmem>>, vector<1x128xf32>
    %cst_71 = arith.constant dense<0.000000e+00> : vector<1x128xf32>
    %267 = tpu.matmul %254, %264, %cst_71 {dimension_numbers = #tpu.dot_dimension_numbers<[1], [0], [0], [1], [0, 0, 1, 1], [], []>} : vector<1x32xf32>, vector<32x128xf32>, vector<1x128xf32> -> vector<1x128xf32>
    %268 = arith.addf %266, %267 : vector<1x128xf32>
    %269 = vector.extract_strided_slice %268 {offsets = [0, 0], sizes = [1, 32], strides = [1, 1]} : vector<1x128xf32> to vector<1x32xf32>
    %270 = arith.negf %269 : vector<1x32xf32>
    %271 = math.exp %270 : vector<1x32xf32>
    %cst_72 = arith.constant 1.000000e+00 : f32
    %272 = vector.broadcast %cst_72 : f32 to vector<1x32xf32>
    %273 = arith.addf %272, %271 : vector<1x32xf32>
    %274 = arith.divf %272, %273 : vector<1x32xf32>
    %275 = vector.extract_strided_slice %268 {offsets = [0, 32], sizes = [1, 32], strides = [1, 1]} : vector<1x128xf32> to vector<1x32xf32>
    %276 = arith.negf %275 : vector<1x32xf32>
    %277 = math.exp %276 : vector<1x32xf32>
    %cst_73 = arith.constant 1.000000e+00 : f32
    %278 = vector.broadcast %cst_73 : f32 to vector<1x32xf32>
    %279 = arith.addf %278, %277 : vector<1x32xf32>
    %280 = arith.divf %278, %279 : vector<1x32xf32>
    %281 = vector.extract_strided_slice %268 {offsets = [0, 64], sizes = [1, 32], strides = [1, 1]} : vector<1x128xf32> to vector<1x32xf32>
    %282 = math.tanh %281 : vector<1x32xf32>
    %283 = vector.extract_strided_slice %268 {offsets = [0, 96], sizes = [1, 32], strides = [1, 1]} : vector<1x128xf32> to vector<1x32xf32>
    %284 = arith.negf %283 : vector<1x32xf32>
    %285 = math.exp %284 : vector<1x32xf32>
    %cst_74 = arith.constant 1.000000e+00 : f32
    %286 = vector.broadcast %cst_74 : f32 to vector<1x32xf32>
    %287 = arith.addf %286, %285 : vector<1x32xf32>
    %288 = arith.divf %286, %287 : vector<1x32xf32>
    %289 = arith.mulf %280, %252 : vector<1x32xf32>
    %290 = arith.mulf %274, %282 : vector<1x32xf32>
    %291 = arith.addf %289, %290 : vector<1x32xf32>
    %292 = math.tanh %291 : vector<1x32xf32>
    %293 = arith.mulf %288, %292 : vector<1x32xf32>
    %294 = arith.index_cast %c0_i32_69 : i32 to index
    %c0_75 = arith.constant 0 : index
    %295 = vector.load %arg15[%294, %c0_75] : memref<8x32xf32, #tpu.memory_space<vmem>>, vector<1x32xf32>
    tpu.vector_store %arg15[%294, %c0_75], %293 {strides = array<i32>} : memref<8x32xf32, #tpu.memory_space<vmem>>, vector<1x32xf32>,
    %c1_i32_76 = arith.constant 1 : i32
    %296 = arith.index_cast %c1_i32_76 : i32 to index
    %c0_77 = arith.constant 0 : index
    %297 = vector.load %arg18[%296, %c0_77] : memref<8x128xf32, #tpu.memory_space<vmem>>, vector<1x128xf32>
    %cst_78 = arith.constant dense<0.000000e+00> : vector<1x128xf32>
    %298 = tpu.matmul %293, %264, %cst_78 {dimension_numbers = #tpu.dot_dimension_numbers<[1], [0], [0], [1], [0, 0, 1, 1], [], []>} : vector<1x32xf32>, vector<32x128xf32>, vector<1x128xf32> -> vector<1x128xf32>
    %299 = arith.addf %297, %298 : vector<1x128xf32>
    %300 = vector.extract_strided_slice %299 {offsets = [0, 0], sizes = [1, 32], strides = [1, 1]} : vector<1x128xf32> to vector<1x32xf32>
    %301 = arith.negf %300 : vector<1x32xf32>
    %302 = math.exp %301 : vector<1x32xf32>
    %cst_79 = arith.constant 1.000000e+00 : f32
    %303 = vector.broadcast %cst_79 : f32 to vector<1x32xf32>
    %304 = arith.addf %303, %302 : vector<1x32xf32>
    %305 = arith.divf %303, %304 : vector<1x32xf32>
    %306 = vector.extract_strided_slice %299 {offsets = [0, 32], sizes = [1, 32], strides = [1, 1]} : vector<1x128xf32> to vector<1x32xf32>
    %307 = arith.negf %306 : vector<1x32xf32>
    %308 = math.exp %307 : vector<1x32xf32>
    %cst_80 = arith.constant 1.000000e+00 : f32
    %309 = vector.broadcast %cst_80 : f32 to vector<1x32xf32>
    %310 = arith.addf %309, %308 : vector<1x32xf32>
    %311 = arith.divf %309, %310 : vector<1x32xf32>
    %312 = vector.extract_strided_slice %299 {offsets = [0, 64], sizes = [1, 32], strides = [1, 1]} : vector<1x128xf32> to vector<1x32xf32>
    %313 = math.tanh %312 : vector<1x32xf32>
    %314 = vector.extract_strided_slice %299 {offsets = [0, 96], sizes = [1, 32], strides = [1, 1]} : vector<1x128xf32> to vector<1x32xf32>
    %315 = arith.negf %314 : vector<1x32xf32>
    %316 = math.exp %315 : vector<1x32xf32>
    %cst_81 = arith.constant 1.000000e+00 : f32
    %317 = vector.broadcast %cst_81 : f32 to vector<1x32xf32>
    %318 = arith.addf %317, %316 : vector<1x32xf32>
    %319 = arith.divf %317, %318 : vector<1x32xf32>
    %320 = arith.mulf %311, %291 : vector<1x32xf32>
    %321 = arith.mulf %305, %313 : vector<1x32xf32>
    %322 = arith.addf %320, %321 : vector<1x32xf32>
    %323 = math.tanh %322 : vector<1x32xf32>
    %324 = arith.mulf %319, %323 : vector<1x32xf32>
    %325 = arith.index_cast %c1_i32_76 : i32 to index
    %c0_82 = arith.constant 0 : index
    %326 = vector.load %arg15[%325, %c0_82] : memref<8x32xf32, #tpu.memory_space<vmem>>, vector<1x32xf32>
    tpu.vector_store %arg15[%325, %c0_82], %324 {strides = array<i32>} : memref<8x32xf32, #tpu.memory_space<vmem>>, vector<1x32xf32>,
    %c2_i32_83 = arith.constant 2 : i32
    %327 = arith.index_cast %c2_i32_83 : i32 to index
    %c0_84 = arith.constant 0 : index
    %328 = vector.load %arg18[%327, %c0_84] : memref<8x128xf32, #tpu.memory_space<vmem>>, vector<1x128xf32>
    %cst_85 = arith.constant dense<0.000000e+00> : vector<1x128xf32>
    %329 = tpu.matmul %324, %264, %cst_85 {dimension_numbers = #tpu.dot_dimension_numbers<[1], [0], [0], [1], [0, 0, 1, 1], [], []>} : vector<1x32xf32>, vector<32x128xf32>, vector<1x128xf32> -> vector<1x128xf32>
    %330 = arith.addf %328, %329 : vector<1x128xf32>
    %331 = vector.extract_strided_slice %330 {offsets = [0, 0], sizes = [1, 32], strides = [1, 1]} : vector<1x128xf32> to vector<1x32xf32>
    %332 = arith.negf %331 : vector<1x32xf32>
    %333 = math.exp %332 : vector<1x32xf32>
    %cst_86 = arith.constant 1.000000e+00 : f32
    %334 = vector.broadcast %cst_86 : f32 to vector<1x32xf32>
    %335 = arith.addf %334, %333 : vector<1x32xf32>
    %336 = arith.divf %334, %335 : vector<1x32xf32>
    %337 = vector.extract_strided_slice %330 {offsets = [0, 32], sizes = [1, 32], strides = [1, 1]} : vector<1x128xf32> to vector<1x32xf32>
    %338 = arith.negf %337 : vector<1x32xf32>
    %339 = math.exp %338 : vector<1x32xf32>
    %cst_87 = arith.constant 1.000000e+00 : f32
    %340 = vector.broadcast %cst_87 : f32 to vector<1x32xf32>
    %341 = arith.addf %340, %339 : vector<1x32xf32>
    %342 = arith.divf %340, %341 : vector<1x32xf32>
    %343 = vector.extract_strided_slice %330 {offsets = [0, 64], sizes = [1, 32], strides = [1, 1]} : vector<1x128xf32> to vector<1x32xf32>
    %344 = math.tanh %343 : vector<1x32xf32>
    %345 = vector.extract_strided_slice %330 {offsets = [0, 96], sizes = [1, 32], strides = [1, 1]} : vector<1x128xf32> to vector<1x32xf32>
    %346 = arith.negf %345 : vector<1x32xf32>
    %347 = math.exp %346 : vector<1x32xf32>
    %cst_88 = arith.constant 1.000000e+00 : f32
    %348 = vector.broadcast %cst_88 : f32 to vector<1x32xf32>
    %349 = arith.addf %348, %347 : vector<1x32xf32>
    %350 = arith.divf %348, %349 : vector<1x32xf32>
    %351 = arith.mulf %342, %322 : vector<1x32xf32>
    %352 = arith.mulf %336, %344 : vector<1x32xf32>
    %353 = arith.addf %351, %352 : vector<1x32xf32>
    %354 = math.tanh %353 : vector<1x32xf32>
    %355 = arith.mulf %350, %354 : vector<1x32xf32>
    %356 = arith.index_cast %c2_i32_83 : i32 to index
    %c0_89 = arith.constant 0 : index
    %357 = vector.load %arg15[%356, %c0_89] : memref<8x32xf32, #tpu.memory_space<vmem>>, vector<1x32xf32>
    tpu.vector_store %arg15[%356, %c0_89], %355 {strides = array<i32>} : memref<8x32xf32, #tpu.memory_space<vmem>>, vector<1x32xf32>,
    %c3_i32_90 = arith.constant 3 : i32
    %358 = arith.index_cast %c3_i32_90 : i32 to index
    %c0_91 = arith.constant 0 : index
    %359 = vector.load %arg18[%358, %c0_91] : memref<8x128xf32, #tpu.memory_space<vmem>>, vector<1x128xf32>
    %cst_92 = arith.constant dense<0.000000e+00> : vector<1x128xf32>
    %360 = tpu.matmul %355, %264, %cst_92 {dimension_numbers = #tpu.dot_dimension_numbers<[1], [0], [0], [1], [0, 0, 1, 1], [], []>} : vector<1x32xf32>, vector<32x128xf32>, vector<1x128xf32> -> vector<1x128xf32>
    %361 = arith.addf %359, %360 : vector<1x128xf32>
    %362 = vector.extract_strided_slice %361 {offsets = [0, 0], sizes = [1, 32], strides = [1, 1]} : vector<1x128xf32> to vector<1x32xf32>
    %363 = arith.negf %362 : vector<1x32xf32>
    %364 = math.exp %363 : vector<1x32xf32>
    %cst_93 = arith.constant 1.000000e+00 : f32
    %365 = vector.broadcast %cst_93 : f32 to vector<1x32xf32>
    %366 = arith.addf %365, %364 : vector<1x32xf32>
    %367 = arith.divf %365, %366 : vector<1x32xf32>
    %368 = vector.extract_strided_slice %361 {offsets = [0, 32], sizes = [1, 32], strides = [1, 1]} : vector<1x128xf32> to vector<1x32xf32>
    %369 = arith.negf %368 : vector<1x32xf32>
    %370 = math.exp %369 : vector<1x32xf32>
    %cst_94 = arith.constant 1.000000e+00 : f32
    %371 = vector.broadcast %cst_94 : f32 to vector<1x32xf32>
    %372 = arith.addf %371, %370 : vector<1x32xf32>
    %373 = arith.divf %371, %372 : vector<1x32xf32>
    %374 = vector.extract_strided_slice %361 {offsets = [0, 64], sizes = [1, 32], strides = [1, 1]} : vector<1x128xf32> to vector<1x32xf32>
    %375 = math.tanh %374 : vector<1x32xf32>
    %376 = vector.extract_strided_slice %361 {offsets = [0, 96], sizes = [1, 32], strides = [1, 1]} : vector<1x128xf32> to vector<1x32xf32>
    %377 = arith.negf %376 : vector<1x32xf32>
    %378 = math.exp %377 : vector<1x32xf32>
    %cst_95 = arith.constant 1.000000e+00 : f32
    %379 = vector.broadcast %cst_95 : f32 to vector<1x32xf32>
    %380 = arith.addf %379, %378 : vector<1x32xf32>
    %381 = arith.divf %379, %380 : vector<1x32xf32>
    %382 = arith.mulf %373, %353 : vector<1x32xf32>
    %383 = arith.mulf %367, %375 : vector<1x32xf32>
    %384 = arith.addf %382, %383 : vector<1x32xf32>
    %385 = math.tanh %384 : vector<1x32xf32>
    %386 = arith.mulf %381, %385 : vector<1x32xf32>
    %387 = arith.index_cast %c3_i32_90 : i32 to index
    %c0_96 = arith.constant 0 : index
    %388 = vector.load %arg15[%387, %c0_96] : memref<8x32xf32, #tpu.memory_space<vmem>>, vector<1x32xf32>
    tpu.vector_store %arg15[%387, %c0_96], %386 {strides = array<i32>} : memref<8x32xf32, #tpu.memory_space<vmem>>, vector<1x32xf32>,
    %c4_i32_97 = arith.constant 4 : i32
    %389 = arith.index_cast %c4_i32_97 : i32 to index
    %c0_98 = arith.constant 0 : index
    %390 = vector.load %arg18[%389, %c0_98] : memref<8x128xf32, #tpu.memory_space<vmem>>, vector<1x128xf32>
    %cst_99 = arith.constant dense<0.000000e+00> : vector<1x128xf32>
    %391 = tpu.matmul %386, %264, %cst_99 {dimension_numbers = #tpu.dot_dimension_numbers<[1], [0], [0], [1], [0, 0, 1, 1], [], []>} : vector<1x32xf32>, vector<32x128xf32>, vector<1x128xf32> -> vector<1x128xf32>
    %392 = arith.addf %390, %391 : vector<1x128xf32>
    %393 = vector.extract_strided_slice %392 {offsets = [0, 0], sizes = [1, 32], strides = [1, 1]} : vector<1x128xf32> to vector<1x32xf32>
    %394 = arith.negf %393 : vector<1x32xf32>
    %395 = math.exp %394 : vector<1x32xf32>
    %cst_100 = arith.constant 1.000000e+00 : f32
    %396 = vector.broadcast %cst_100 : f32 to vector<1x32xf32>
    %397 = arith.addf %396, %395 : vector<1x32xf32>
    %398 = arith.divf %396, %397 : vector<1x32xf32>
    %399 = vector.extract_strided_slice %392 {offsets = [0, 32], sizes = [1, 32], strides = [1, 1]} : vector<1x128xf32> to vector<1x32xf32>
    %400 = arith.negf %399 : vector<1x32xf32>
    %401 = math.exp %400 : vector<1x32xf32>
    %cst_101 = arith.constant 1.000000e+00 : f32
    %402 = vector.broadcast %cst_101 : f32 to vector<1x32xf32>
    %403 = arith.addf %402, %401 : vector<1x32xf32>
    %404 = arith.divf %402, %403 : vector<1x32xf32>
    %405 = vector.extract_strided_slice %392 {offsets = [0, 64], sizes = [1, 32], strides = [1, 1]} : vector<1x128xf32> to vector<1x32xf32>
    %406 = math.tanh %405 : vector<1x32xf32>
    %407 = vector.extract_strided_slice %392 {offsets = [0, 96], sizes = [1, 32], strides = [1, 1]} : vector<1x128xf32> to vector<1x32xf32>
    %408 = arith.negf %407 : vector<1x32xf32>
    %409 = math.exp %408 : vector<1x32xf32>
    %cst_102 = arith.constant 1.000000e+00 : f32
    %410 = vector.broadcast %cst_102 : f32 to vector<1x32xf32>
    %411 = arith.addf %410, %409 : vector<1x32xf32>
    %412 = arith.divf %410, %411 : vector<1x32xf32>
    %413 = arith.mulf %404, %384 : vector<1x32xf32>
    %414 = arith.mulf %398, %406 : vector<1x32xf32>
    %415 = arith.addf %413, %414 : vector<1x32xf32>
    %416 = math.tanh %415 : vector<1x32xf32>
    %417 = arith.mulf %412, %416 : vector<1x32xf32>
    %418 = arith.index_cast %c4_i32_97 : i32 to index
    %c0_103 = arith.constant 0 : index
    %419 = vector.load %arg15[%418, %c0_103] : memref<8x32xf32, #tpu.memory_space<vmem>>, vector<1x32xf32>
    tpu.vector_store %arg15[%418, %c0_103], %417 {strides = array<i32>} : memref<8x32xf32, #tpu.memory_space<vmem>>, vector<1x32xf32>,
    %c5_i32_104 = arith.constant 5 : i32
    %420 = arith.index_cast %c5_i32_104 : i32 to index
    %c0_105 = arith.constant 0 : index
    %421 = vector.load %arg18[%420, %c0_105] : memref<8x128xf32, #tpu.memory_space<vmem>>, vector<1x128xf32>
    %cst_106 = arith.constant dense<0.000000e+00> : vector<1x128xf32>
    %422 = tpu.matmul %417, %264, %cst_106 {dimension_numbers = #tpu.dot_dimension_numbers<[1], [0], [0], [1], [0, 0, 1, 1], [], []>} : vector<1x32xf32>, vector<32x128xf32>, vector<1x128xf32> -> vector<1x128xf32>
    %423 = arith.addf %421, %422 : vector<1x128xf32>
    %424 = vector.extract_strided_slice %423 {offsets = [0, 0], sizes = [1, 32], strides = [1, 1]} : vector<1x128xf32> to vector<1x32xf32>
    %425 = arith.negf %424 : vector<1x32xf32>
    %426 = math.exp %425 : vector<1x32xf32>
    %cst_107 = arith.constant 1.000000e+00 : f32
    %427 = vector.broadcast %cst_107 : f32 to vector<1x32xf32>
    %428 = arith.addf %427, %426 : vector<1x32xf32>
    %429 = arith.divf %427, %428 : vector<1x32xf32>
    %430 = vector.extract_strided_slice %423 {offsets = [0, 32], sizes = [1, 32], strides = [1, 1]} : vector<1x128xf32> to vector<1x32xf32>
    %431 = arith.negf %430 : vector<1x32xf32>
    %432 = math.exp %431 : vector<1x32xf32>
    %cst_108 = arith.constant 1.000000e+00 : f32
    %433 = vector.broadcast %cst_108 : f32 to vector<1x32xf32>
    %434 = arith.addf %433, %432 : vector<1x32xf32>
    %435 = arith.divf %433, %434 : vector<1x32xf32>
    %436 = vector.extract_strided_slice %423 {offsets = [0, 64], sizes = [1, 32], strides = [1, 1]} : vector<1x128xf32> to vector<1x32xf32>
    %437 = math.tanh %436 : vector<1x32xf32>
    %438 = vector.extract_strided_slice %423 {offsets = [0, 96], sizes = [1, 32], strides = [1, 1]} : vector<1x128xf32> to vector<1x32xf32>
    %439 = arith.negf %438 : vector<1x32xf32>
    %440 = math.exp %439 : vector<1x32xf32>
    %cst_109 = arith.constant 1.000000e+00 : f32
    %441 = vector.broadcast %cst_109 : f32 to vector<1x32xf32>
    %442 = arith.addf %441, %440 : vector<1x32xf32>
    %443 = arith.divf %441, %442 : vector<1x32xf32>
    %444 = arith.mulf %435, %415 : vector<1x32xf32>
    %445 = arith.mulf %429, %437 : vector<1x32xf32>
    %446 = arith.addf %444, %445 : vector<1x32xf32>
    %447 = math.tanh %446 : vector<1x32xf32>
    %448 = arith.mulf %443, %447 : vector<1x32xf32>
    %449 = arith.index_cast %c5_i32_104 : i32 to index
    %c0_110 = arith.constant 0 : index
    %450 = vector.load %arg15[%449, %c0_110] : memref<8x32xf32, #tpu.memory_space<vmem>>, vector<1x32xf32>
    tpu.vector_store %arg15[%449, %c0_110], %448 {strides = array<i32>} : memref<8x32xf32, #tpu.memory_space<vmem>>, vector<1x32xf32>,
    %c6_i32_111 = arith.constant 6 : i32
    %451 = arith.index_cast %c6_i32_111 : i32 to index
    %c0_112 = arith.constant 0 : index
    %452 = vector.load %arg18[%451, %c0_112] : memref<8x128xf32, #tpu.memory_space<vmem>>, vector<1x128xf32>
    %cst_113 = arith.constant dense<0.000000e+00> : vector<1x128xf32>
    %453 = tpu.matmul %448, %264, %cst_113 {dimension_numbers = #tpu.dot_dimension_numbers<[1], [0], [0], [1], [0, 0, 1, 1], [], []>} : vector<1x32xf32>, vector<32x128xf32>, vector<1x128xf32> -> vector<1x128xf32>
    %454 = arith.addf %452, %453 : vector<1x128xf32>
    %455 = vector.extract_strided_slice %454 {offsets = [0, 0], sizes = [1, 32], strides = [1, 1]} : vector<1x128xf32> to vector<1x32xf32>
    %456 = arith.negf %455 : vector<1x32xf32>
    %457 = math.exp %456 : vector<1x32xf32>
    %cst_114 = arith.constant 1.000000e+00 : f32
    %458 = vector.broadcast %cst_114 : f32 to vector<1x32xf32>
    %459 = arith.addf %458, %457 : vector<1x32xf32>
    %460 = arith.divf %458, %459 : vector<1x32xf32>
    %461 = vector.extract_strided_slice %454 {offsets = [0, 32], sizes = [1, 32], strides = [1, 1]} : vector<1x128xf32> to vector<1x32xf32>
    %462 = arith.negf %461 : vector<1x32xf32>
    %463 = math.exp %462 : vector<1x32xf32>
    %cst_115 = arith.constant 1.000000e+00 : f32
    %464 = vector.broadcast %cst_115 : f32 to vector<1x32xf32>
    %465 = arith.addf %464, %463 : vector<1x32xf32>
    %466 = arith.divf %464, %465 : vector<1x32xf32>
    %467 = vector.extract_strided_slice %454 {offsets = [0, 64], sizes = [1, 32], strides = [1, 1]} : vector<1x128xf32> to vector<1x32xf32>
    %468 = math.tanh %467 : vector<1x32xf32>
    %469 = vector.extract_strided_slice %454 {offsets = [0, 96], sizes = [1, 32], strides = [1, 1]} : vector<1x128xf32> to vector<1x32xf32>
    %470 = arith.negf %469 : vector<1x32xf32>
    %471 = math.exp %470 : vector<1x32xf32>
    %cst_116 = arith.constant 1.000000e+00 : f32
    %472 = vector.broadcast %cst_116 : f32 to vector<1x32xf32>
    %473 = arith.addf %472, %471 : vector<1x32xf32>
    %474 = arith.divf %472, %473 : vector<1x32xf32>
    %475 = arith.mulf %466, %446 : vector<1x32xf32>
    %476 = arith.mulf %460, %468 : vector<1x32xf32>
    %477 = arith.addf %475, %476 : vector<1x32xf32>
    %478 = math.tanh %477 : vector<1x32xf32>
    %479 = arith.mulf %474, %478 : vector<1x32xf32>
    %480 = arith.index_cast %c6_i32_111 : i32 to index
    %c0_117 = arith.constant 0 : index
    %481 = vector.load %arg15[%480, %c0_117] : memref<8x32xf32, #tpu.memory_space<vmem>>, vector<1x32xf32>
    tpu.vector_store %arg15[%480, %c0_117], %479 {strides = array<i32>} : memref<8x32xf32, #tpu.memory_space<vmem>>, vector<1x32xf32>,
    %c7_i32_118 = arith.constant 7 : i32
    %482 = arith.index_cast %c7_i32_118 : i32 to index
    %c0_119 = arith.constant 0 : index
    %483 = vector.load %arg18[%482, %c0_119] : memref<8x128xf32, #tpu.memory_space<vmem>>, vector<1x128xf32>
    %cst_120 = arith.constant dense<0.000000e+00> : vector<1x128xf32>
    %484 = tpu.matmul %479, %264, %cst_120 {dimension_numbers = #tpu.dot_dimension_numbers<[1], [0], [0], [1], [0, 0, 1, 1], [], []>} : vector<1x32xf32>, vector<32x128xf32>, vector<1x128xf32> -> vector<1x128xf32>
    %485 = arith.addf %483, %484 : vector<1x128xf32>
    %486 = vector.extract_strided_slice %485 {offsets = [0, 0], sizes = [1, 32], strides = [1, 1]} : vector<1x128xf32> to vector<1x32xf32>
    %487 = arith.negf %486 : vector<1x32xf32>
    %488 = math.exp %487 : vector<1x32xf32>
    %cst_121 = arith.constant 1.000000e+00 : f32
    %489 = vector.broadcast %cst_121 : f32 to vector<1x32xf32>
    %490 = arith.addf %489, %488 : vector<1x32xf32>
    %491 = arith.divf %489, %490 : vector<1x32xf32>
    %492 = vector.extract_strided_slice %485 {offsets = [0, 32], sizes = [1, 32], strides = [1, 1]} : vector<1x128xf32> to vector<1x32xf32>
    %493 = arith.negf %492 : vector<1x32xf32>
    %494 = math.exp %493 : vector<1x32xf32>
    %cst_122 = arith.constant 1.000000e+00 : f32
    %495 = vector.broadcast %cst_122 : f32 to vector<1x32xf32>
    %496 = arith.addf %495, %494 : vector<1x32xf32>
    %497 = arith.divf %495, %496 : vector<1x32xf32>
    %498 = vector.extract_strided_slice %485 {offsets = [0, 64], sizes = [1, 32], strides = [1, 1]} : vector<1x128xf32> to vector<1x32xf32>
    %499 = math.tanh %498 : vector<1x32xf32>
    %500 = vector.extract_strided_slice %485 {offsets = [0, 96], sizes = [1, 32], strides = [1, 1]} : vector<1x128xf32> to vector<1x32xf32>
    %501 = arith.negf %500 : vector<1x32xf32>
    %502 = math.exp %501 : vector<1x32xf32>
    %cst_123 = arith.constant 1.000000e+00 : f32
    %503 = vector.broadcast %cst_123 : f32 to vector<1x32xf32>
    %504 = arith.addf %503, %502 : vector<1x32xf32>
    %505 = arith.divf %503, %504 : vector<1x32xf32>
    %506 = arith.mulf %497, %477 : vector<1x32xf32>
    %507 = arith.mulf %491, %499 : vector<1x32xf32>
    %508 = arith.addf %506, %507 : vector<1x32xf32>
    %509 = math.tanh %508 : vector<1x32xf32>
    %510 = arith.mulf %505, %509 : vector<1x32xf32>
    %511 = arith.index_cast %c7_i32_118 : i32 to index
    %c0_124 = arith.constant 0 : index
    %512 = vector.load %arg15[%511, %c0_124] : memref<8x32xf32, #tpu.memory_space<vmem>>, vector<1x32xf32>
    tpu.vector_store %arg15[%511, %c0_124], %510 {strides = array<i32>} : memref<8x32xf32, #tpu.memory_space<vmem>>, vector<1x32xf32>,
    %c8_i32_125 = arith.constant 8 : i32
    %c0_126 = arith.constant 0 : index
    %c0_127 = arith.constant 0 : index
    %513 = vector.load %arg16[%c0_126, %c0_127] : memref<1x32xf32, #tpu.memory_space<vmem>>, vector<1x32xf32>
    tpu.vector_store %arg16[%c0_126, %c0_127], %510 {strides = array<i32>} : memref<1x32xf32, #tpu.memory_space<vmem>>, vector<1x32xf32>,
    %c0_128 = arith.constant 0 : index
    %c0_129 = arith.constant 0 : index
    %514 = vector.load %arg17[%c0_128, %c0_129] : memref<1x32xf32, #tpu.memory_space<vmem>>, vector<1x32xf32>
    tpu.vector_store %arg17[%c0_128, %c0_129], %508 {strides = array<i32>} : memref<1x32xf32, #tpu.memory_space<vmem>>, vector<1x32xf32>,
    %c0_130 = arith.constant 0 : index
    %c0_131 = arith.constant 0 : index
    %515 = vector.load %arg15[%c0_130, %c0_131] : memref<8x32xf32, #tpu.memory_space<vmem>>, vector<8x32xf32>
    %c0_132 = arith.constant 0 : index
    %c0_133 = arith.constant 0 : index
    %516 = vector.load %arg9[%c0_132, %c0_133] : memref<32x32xf32, #tpu.memory_space<vmem>>, vector<32x32xf32>
    %cst_134 = arith.constant dense<0.000000e+00> : vector<8x32xf32>
    %517 = tpu.matmul %515, %516, %cst_134 {dimension_numbers = #tpu.dot_dimension_numbers<[1], [0], [0], [1], [0, 0, 1, 1], [], []>} : vector<8x32xf32>, vector<32x32xf32>, vector<8x32xf32> -> vector<8x32xf32>
    %c0_135 = arith.constant 0 : index
    %c0_136 = arith.constant 0 : index
    %518 = vector.load %arg8[%c0_135, %c0_136] : memref<32x136xf32, #tpu.memory_space<vmem>>, vector<32x136xf32>
    %c0_137 = arith.constant 0 : index
    %c0_138 = arith.constant 0 : index
    %519 = vector.load %arg10[%c0_137, %c0_138] : memref<32x128xf32, #tpu.memory_space<vmem>>, vector<32x128xf32>
    %c0_139 = arith.constant 0 : index
    %c0_140 = arith.constant 0 : index
    %520 = vector.load %arg11[%c0_139, %c0_140] : memref<1x128xf32, #tpu.memory_space<vmem>>, vector<1x128xf32>
    %c0_141 = arith.constant 0 : index
    %c0_142 = arith.constant 0 : index
    %521 = vector.load %arg12[%c0_141, %c0_142] : memref<32x16xf32, #tpu.memory_space<vmem>>, vector<32x16xf32>
    %c0_143 = arith.constant 0 : index
    %c0_144 = arith.constant 0 : index
    %522 = vector.load %arg13[%c0_143, %c0_144] : memref<1x16xf32, #tpu.memory_space<vmem>>, vector<1x16xf32>
    %c0_i32_145 = arith.constant 0 : i32
    %c1_i32_146 = arith.constant 1 : i32
    %523:4 = scf.while (%arg20 = %c0_i32_145, %arg21 = %c1_i32_146, %arg22 = %510, %arg23 = %508) : (i32, i32, vector<1x32xf32>, vector<1x32xf32>) -> (i32, i32, vector<1x32xf32>, vector<1x32xf32>) {
      %c100_i32_149 = arith.constant 100 : i32
      %526 = arith.cmpi slt, %arg20, %c100_i32_149 : i32
      %c2_i32_150 = arith.constant 2 : i32
      %527 = arith.cmpi ne, %arg21, %c2_i32_150 : i32
      %528 = arith.andi %526, %527 : i1
      scf.condition(%528) %arg20, %arg21, %arg22, %arg23 : i32, i32, vector<1x32xf32>, vector<1x32xf32>
    } do {
    ^bb0(%arg20: i32, %arg21: i32, %arg22: vector<1x32xf32>, %arg23: vector<1x32xf32>):
      %526 = arith.index_cast %arg21 : i32 to index
      %c0_149 = arith.constant 0 : index
      %527 = vector.load %arg7[%526, %c0_149] : memref<16x136xf32, #tpu.memory_space<vmem>>, vector<1x136xf32>
      %cst_150 = arith.constant dense<0.000000e+00> : vector<1x136xf32>
      %528 = tpu.matmul %arg22, %518, %cst_150 {dimension_numbers = #tpu.dot_dimension_numbers<[1], [0], [0], [1], [0, 0, 1, 1], [], []>} : vector<1x32xf32>, vector<32x136xf32>, vector<1x136xf32> -> vector<1x136xf32>
      %529 = vector.extract_strided_slice %527 {offsets = [0, 128], sizes = [1, 8], strides = [1, 1]} : vector<1x136xf32> to vector<1x8xf32>
      %530 = vector.extract_strided_slice %528 {offsets = [0, 128], sizes = [1, 8], strides = [1, 1]} : vector<1x136xf32> to vector<1x8xf32>
      %531 = arith.addf %529, %530 : vector<1x8xf32>
      %cst_151 = arith.constant dense<0xFF800000> : vector<1xf32>
      %532 = vector.multi_reduction <maximumf>, %531, %cst_151 [1] : vector<1x8xf32> to vector<1xf32>
      %533 = vector.shape_cast %532 : vector<1xf32> to vector<1x1xf32>
      %534 = vector.broadcast %533 : vector<1x1xf32> to vector<1x8xf32>
      %535 = arith.subf %531, %534 : vector<1x8xf32>
      %536 = math.exp %535 : vector<1x8xf32>
      %cst_152 = arith.constant dense<0.000000e+00> : vector<1xf32>
      %537 = vector.multi_reduction <add>, %536, %cst_152 [1] : vector<1x8xf32> to vector<1xf32>
      %538 = vector.shape_cast %537 : vector<1xf32> to vector<1x1xf32>
      %539 = tpu.reciprocal %538 {approx = true} : vector<1x1xf32> -> vector<1x1xf32>
      %540 = vector.broadcast %539 : vector<1x1xf32> to vector<1x8xf32>
      %541 = arith.mulf %536, %540 : vector<1x8xf32>
      %542 = vector.extract_strided_slice %527 {offsets = [0, 0], sizes = [1, 32], strides = [1, 1]} : vector<1x136xf32> to vector<1x32xf32>
      %cst_153 = arith.constant dense<0.000000e+00> : vector<1x32xf32>
      %543 = tpu.matmul %541, %517, %cst_153 {dimension_numbers = #tpu.dot_dimension_numbers<[1], [0], [0], [1], [0, 0, 1, 1], [], []>} : vector<1x8xf32>, vector<8x32xf32>, vector<1x32xf32> -> vector<1x32xf32>
      %544 = arith.addf %542, %543 : vector<1x32xf32>
      %cst_154 = arith.constant 0.000000e+00 : f32
      %545 = vector.broadcast %cst_154 : f32 to vector<1x32xf32>
      %546 = arith.maximumf %544, %545 : vector<1x32xf32>
      %cst_155 = arith.constant dense<0.000000e+00> : vector<1x128xf32>
      %547 = tpu.matmul %546, %519, %cst_155 {dimension_numbers = #tpu.dot_dimension_numbers<[1], [0], [0], [1], [0, 0, 1, 1], [], []>} : vector<1x32xf32>, vector<32x128xf32>, vector<1x128xf32> -> vector<1x128xf32>
      %548 = vector.extract_strided_slice %528 {offsets = [0, 0], sizes = [1, 128], strides = [1, 1]} : vector<1x136xf32> to vector<1x128xf32>
      %549 = arith.addf %547, %548 : vector<1x128xf32>
      %550 = arith.addf %549, %520 : vector<1x128xf32>
      %551 = vector.extract_strided_slice %550 {offsets = [0, 0], sizes = [1, 32], strides = [1, 1]} : vector<1x128xf32> to vector<1x32xf32>
      %552 = arith.negf %551 : vector<1x32xf32>
      %553 = math.exp %552 : vector<1x32xf32>
      %cst_156 = arith.constant 1.000000e+00 : f32
      %554 = vector.broadcast %cst_156 : f32 to vector<1x32xf32>
      %555 = arith.addf %554, %553 : vector<1x32xf32>
      %556 = arith.divf %554, %555 : vector<1x32xf32>
      %557 = vector.extract_strided_slice %550 {offsets = [0, 32], sizes = [1, 32], strides = [1, 1]} : vector<1x128xf32> to vector<1x32xf32>
      %558 = arith.negf %557 : vector<1x32xf32>
      %559 = math.exp %558 : vector<1x32xf32>
      %cst_157 = arith.constant 1.000000e+00 : f32
      %560 = vector.broadcast %cst_157 : f32 to vector<1x32xf32>
      %561 = arith.addf %560, %559 : vector<1x32xf32>
      %562 = arith.divf %560, %561 : vector<1x32xf32>
      %563 = vector.extract_strided_slice %550 {offsets = [0, 64], sizes = [1, 32], strides = [1, 1]} : vector<1x128xf32> to vector<1x32xf32>
      %564 = math.tanh %563 : vector<1x32xf32>
      %565 = vector.extract_strided_slice %550 {offsets = [0, 96], sizes = [1, 32], strides = [1, 1]} : vector<1x128xf32> to vector<1x32xf32>
      %566 = arith.negf %565 : vector<1x32xf32>
      %567 = math.exp %566 : vector<1x32xf32>
      %cst_158 = arith.constant 1.000000e+00 : f32
      %568 = vector.broadcast %cst_158 : f32 to vector<1x32xf32>
      %569 = arith.addf %568, %567 : vector<1x32xf32>
      %570 = arith.divf %568, %569 : vector<1x32xf32>
      %571 = arith.mulf %562, %arg23 : vector<1x32xf32>
      %572 = arith.mulf %556, %564 : vector<1x32xf32>
      %573 = arith.addf %571, %572 : vector<1x32xf32>
      %574 = math.tanh %573 : vector<1x32xf32>
      %575 = arith.mulf %570, %574 : vector<1x32xf32>
      %cst_159 = arith.constant dense<0.000000e+00> : vector<1x16xf32>
      %576 = tpu.matmul %575, %521, %cst_159 {dimension_numbers = #tpu.dot_dimension_numbers<[1], [0], [0], [1], [0, 0, 1, 1], [], []>} : vector<1x32xf32>, vector<32x16xf32>, vector<1x16xf32> -> vector<1x16xf32>
      %577 = arith.addf %576, %522 : vector<1x16xf32>
      %578 = tpu.reduce_index %577 {axis = 1 : i32, kind = #tpu.reduction_kind<arg_max>} : vector<1x16xf32> -> vector<1xi32>
      %579 = vector.extract %578[0] : i32 from vector<1xi32>
      %580 = arith.index_cast %arg20 : i32 to index
      %581 = memref.load %arg14[%580] : memref<100xi32, #tpu.memory_space<smem>>
      memref.store %579, %arg14[%580] : memref<100xi32, #tpu.memory_space<smem>>
      %c1_i32_160 = arith.constant 1 : i32
      %582 = arith.addi %arg20, %c1_i32_160 : i32
      scf.yield %582, %579, %575, %573 : i32, i32, vector<1x32xf32>, vector<1x32xf32>
    }
    %c0_i32_147 = arith.constant 0 : i32
    %c100_i32 = arith.constant 100 : i32
    %524 = arith.subi %c100_i32, %523#0 : i32
    %525 = arith.addi %523#0, %524 : i32
    %c1_i32_148 = arith.constant 1 : i32
    scf.for %arg20 = %523#0 to %525 step %c1_i32_148  : i32 {
      %c0_i32_149 = arith.constant 0 : i32
      %526 = arith.index_cast %arg20 : i32 to index
      %527 = memref.load %arg14[%526] : memref<100xi32, #tpu.memory_space<smem>>
      memref.store %c0_i32_149, %arg14[%526] : memref<100xi32, #tpu.memory_space<smem>>
    }
    return
  }
}

</mosaic_0001>

<llo_original>
// kernel: forward_e2e.1
$region0: #{forward_e2e.1}
  #allocation0 [shape = 'u32[]', space=smem, size = 0x4, offset = 0x4, fixed_abs, tag = 'smem constant byte address 0x4 - core index']
  #allocation1 [shape = 'u32[72,128]{1,0:T(1,128)}', space=vmem, size = 0x9000, scoped, tag = 'internal scratch']
  #allocation2 [shape = 'f32[8,128]{1,0:T(8,128)}', space=vmem, size = 0x1000, scoped, tag = 'scratch operand']
  #allocation3 [shape = 'f32[8,32]{1,0:T(8,128)}', space=vmem, size = 0x1000, scoped, tag = 'scratch operand']
  %s0 = inlined_call_operand.vmem [shape: f32[8,32], index: 0, kind: input, shape index: {}]
  %s1 = inlined_call_operand.vmem [shape: f32[32,128], index: 1, kind: input, shape index: {}]
  %s2 = inlined_call_operand.hbm [shape: f32[32,128], index: 2, kind: input, shape index: {}]
  %s3 = inlined_call_operand.vmem [shape: f32[1,128], index: 3, kind: input, shape index: {}]
  %s4 = inlined_call_operand.hbm [shape: f32[32,128], index: 4, kind: input, shape index: {}]
  %s5 = inlined_call_operand.hbm [shape: f32[32,128], index: 5, kind: input, shape index: {}]
  %s6 = inlined_call_operand.vmem [shape: f32[1,128], index: 6, kind: input, shape index: {}]
  %s7 = inlined_call_operand.hbm [shape: f32[16,136], index: 7, kind: input, shape index: {}]
  %s8 = inlined_call_operand.vmem [shape: f32[32,136], index: 8, kind: input, shape index: {}]
  %s9 = inlined_call_operand.hbm [shape: f32[32,32], index: 9, kind: input, shape index: {}]
  %s10 = inlined_call_operand.hbm [shape: f32[32,128], index: 10, kind: input, shape index: {}]
  %s11 = inlined_call_operand.vmem [shape: f32[1,128], index: 11, kind: input, shape index: {}]
  %s12 = inlined_call_operand.vmem [shape: f32[32,16], index: 12, kind: input, shape index: {}]
  %s13 = inlined_call_operand.vmem [shape: f32[1,16], index: 13, kind: input, shape index: {}]
  %s14 = inlined_call_operand.vmem [shape: s32[100], index: 14, kind: output, shape index: {0}]
  %s15 = inlined_call_operand.hbm [shape: f32[8,32], index: 15, kind: output, shape index: {1}]
  %s16 = inlined_call_operand.hbm [shape: f32[1,32], index: 16, kind: output, shape index: {2}]
  %s17 = inlined_call_operand.hbm [shape: f32[1,32], index: 17, kind: output, shape index: {3}]
  %18 = xla_tuple %s14, %s15, %s16, %s17
  %s19 = sld [smem:[#allocation0]]
  $region128: #{forward_e2e.1} parent=0
    _
  %s21 = ssub.s32 1, %s19
  %s22 = scalar_select 0, %s21, %s19
  $region1: #{forward_e2e.1} parent=0
    #allocation4 [shape = 'u8[16384]{0}', space=vmem, size = 0x4000, scoped, tag = 'input window, operand 2, single buffered']
    #allocation5 [shape = 's32[1]{0}', space=sflag, size = 0x4, scoped, tag = 'scoped memory for forward_e2e.1']
    #allocation6 [shape = 's32[1]{0}', space=sflag, size = 0x4, scoped, tag = 'scoped memory for forward_e2e.1']
    #allocation7 [shape = 's32[1]{0}', space=sflag, size = 0x4, scoped, tag = 'scoped memory for forward_e2e.1']
    #allocation8 [shape = 'u8[16384]{0}', space=vmem, size = 0x4000, scoped, tag = 'input window, operand 4, single buffered']
    #allocation9 [shape = 's32[1]{0}', space=sflag, size = 0x4, scoped, tag = 'scoped memory for forward_e2e.1']
    #allocation10 [shape = 'u8[16384]{0}', space=vmem, size = 0x4000, scoped, tag = 'input window, operand 5, single buffered']
    #allocation11 [shape = 'u8[16384]{0}', space=vmem, size = 0x4000, scoped, tag = 'input window, operand 7, single buffered']
    #allocation12 [shape = 's32[1]{0}', space=sflag, size = 0x4, scoped, tag = 'scoped memory for forward_e2e.1']
    #allocation13 [shape = 'u8[16384]{0}', space=vmem, size = 0x4000, scoped, tag = 'input window, operand 9, single buffered']
    #allocation14 [shape = 'u8[16384]{0}', space=vmem, size = 0x4000, scoped, tag = 'input window, operand 10, single buffered']
    #allocation15 [shape = 's32[1]{0}', space=sflag, size = 0x4, scoped, tag = 'scoped memory for forward_e2e.1']
    #allocation16 [shape = 'u8[512]{0}', space=smem, size = 0x200, scoped, tag = 'output window, operand 0, single buffered']
    #allocation17 [shape = 'u8[4096]{0}', space=vmem, size = 0x1000, scoped, tag = 'output window, operand 1, single buffered']
    #allocation18 [shape = 'u8[512]{0}', space=vmem, size = 0x400, scoped, tag = 'output window, operand 2, single buffered']
    #allocation19 [shape = 's32[1]{0}', space=sflag, size = 0x4, scoped, tag = 'scoped memory for forward_e2e.1']
    #allocation20 [shape = 'u8[512]{0}', space=vmem, size = 0x400, scoped, tag = 'output window, operand 3, single buffered']
    %23 = vsyncpa [#allocation5], 0
    %24 = vsyncpa [#allocation9], 0
    %25 = vsyncpa [#allocation12], 0
    %26 = vsyncpa [#allocation15], 0
    %27 = vsyncpa [#allocation7], 0
    %28 = vsyncpa [#allocation6], 0
    %29 = vsyncpa [#allocation19], 0
    // Predicated region
    $region2: #{forward_e2e.1} parent=1 // pred_check
      _
    $region3: #{forward_e2e.1} parent=1 // pred_check_branch
      %31 = sbr.rel (0) target = $region5
    $region4: #{forward_e2e.1} parent=1 // pred_region
      _
    $region5: #{forward_e2e.1} parent=1 // pred_fallthru
      _
    // Predicated region
    $region6: #{forward_e2e.1} parent=1 // pred_check
      _
    $region7: #{forward_e2e.1} parent=1 // pred_check_branch
      %33 = sbr.rel (0) target = $region9
    $region8: #{forward_e2e.1} parent=1 // pred_region
      _
    $region9: #{forward_e2e.1} parent=1 // pred_fallthru
      _
    // Predicated region
    $region10: #{forward_e2e.1} parent=1 // pred_check
      _
    $region11: #{forward_e2e.1} parent=1 // pred_check_branch
      %35 = sbr.rel (0) target = $region13
    $region12: #{forward_e2e.1} parent=1 // pred_region
      %37 = vsyncadd [#allocation5], 0
      %s38 = sshll.u32 %s2, 4
      %s39 = int_to_ptr.hbm [resolvable:$true] %s38
      %s40 = sshll.u32 [#allocation4], 4
      %s41 = int_to_ptr.vmem [resolvable:$true] %s40
      %46 = dma.hbm_to_vmem [thread:$0]  %s39, 512, %s41, [#allocation5], 128, 128, 8
    $region13: #{forward_e2e.1} parent=1 // pred_fallthru
      _
    // Predicated region
    $region14: #{forward_e2e.1} parent=1 // pred_check
      _
    $region15: #{forward_e2e.1} parent=1 // pred_check_branch
      %48 = sbr.rel (0) target = $region17
    $region16: #{forward_e2e.1} parent=1 // pred_region
      _
    $region17: #{forward_e2e.1} parent=1 // pred_fallthru
      _
    // Predicated region
    $region18: #{forward_e2e.1} parent=1 // pred_check
      _
    $region19: #{forward_e2e.1} parent=1 // pred_check_branch
      %50 = sbr.rel (0) target = $region21
    $region20: #{forward_e2e.1} parent=1 // pred_region
      %52 = vsyncadd [#allocation9], 0
      %s53 = sshll.u32 %s4, 4
      %s54 = int_to_ptr.hbm [resolvable:$true] %s53
      %s55 = sshll.u32 [#allocation8], 4
      %s56 = int_to_ptr.vmem [resolvable:$true] %s55
      %61 = dma.hbm_to_vmem [thread:$0]  %s54, 512, %s56, [#allocation9], 128, 128, 8
    $region21: #{forward_e2e.1} parent=1 // pred_fallthru
      _
    // Predicated region
    $region22: #{forward_e2e.1} parent=1 // pred_check
      _
    $region23: #{forward_e2e.1} parent=1 // pred_check_branch
      %63 = sbr.rel (0) target = $region25
    $region24: #{forward_e2e.1} parent=1 // pred_region
      %65 = vsyncadd [#allocation9], 0
      %s66 = sshll.u32 %s5, 4
      %s67 = int_to_ptr.hbm [resolvable:$true] %s66
      %s68 = sshll.u32 [#allocation10], 4
      %s69 = int_to_ptr.vmem [resolvable:$true] %s68
      %74 = dma.hbm_to_vmem [thread:$0]  %s67, 512, %s69, [#allocation9], 128, 128, 8
    $region25: #{forward_e2e.1} parent=1 // pred_fallthru
      _
    // Predicated region
    $region26: #{forward_e2e.1} parent=1 // pred_check
      _
    $region27: #{forward_e2e.1} parent=1 // pred_check_branch
      %76 = sbr.rel (0) target = $region29
    $region28: #{forward_e2e.1} parent=1 // pred_region
      _
    $region29: #{forward_e2e.1} parent=1 // pred_fallthru
      _
    // Predicated region
    $region30: #{forward_e2e.1} parent=1 // pred_check
      _
    $region31: #{forward_e2e.1} parent=1 // pred_check_branch
      %78 = sbr.rel (0) target = $region33
    $region32: #{forward_e2e.1} parent=1 // pred_region
      %80 = vsyncadd [#allocation12], 0
      %s81 = sshll.u32 %s7, 4
      %s82 = int_to_ptr.hbm [resolvable:$true] %s81
      %s83 = sshll.u32 [#allocation11], 4
      %s84 = int_to_ptr.vmem [resolvable:$true] %s83
      %89 = dma.hbm_to_vmem [thread:$0]  %s82, 512, %s84, [#allocation12], 256, 256, 16
    $region33: #{forward_e2e.1} parent=1 // pred_fallthru
      _
    // Predicated region
    $region34: #{forward_e2e.1} parent=1 // pred_check
      _
    $region35: #{forward_e2e.1} parent=1 // pred_check_branch
      %91 = sbr.rel (0) target = $region37
    $region36: #{forward_e2e.1} parent=1 // pred_region
      _
    $region37: #{forward_e2e.1} parent=1 // pred_fallthru
      _
    // Predicated region
    $region38: #{forward_e2e.1} parent=1 // pred_check
      _
    $region39: #{forward_e2e.1} parent=1 // pred_check_branch
      %93 = sbr.rel (0) target = $region41
    $region40: #{forward_e2e.1} parent=1 // pred_region
      %95 = vsyncadd [#allocation12], 0
      %s96 = sshll.u32 %s9, 4
      %s97 = int_to_ptr.hbm [resolvable:$true] %s96
      %s98 = sshll.u32 [#allocation13], 4
      %s99 = int_to_ptr.vmem [resolvable:$true] %s98
      %104 = dma.hbm_to_vmem [thread:$0]  %s97, 512, %s99, [#allocation12], 128, 128, 8
    $region41: #{forward_e2e.1} parent=1 // pred_fallthru
      _
    // Predicated region
    $region42: #{forward_e2e.1} parent=1 // pred_check
      _
    $region43: #{forward_e2e.1} parent=1 // pred_check_branch
      %106 = sbr.rel (0) target = $region45
    $region44: #{forward_e2e.1} parent=1 // pred_region
      %108 = vsyncadd [#allocation15], 0
      %s109 = sshll.u32 %s10, 4
      %s110 = int_to_ptr.hbm [resolvable:$true] %s109
      %s111 = sshll.u32 [#allocation14], 4
      %s112 = int_to_ptr.vmem [resolvable:$true] %s111
      %117 = dma.hbm_to_vmem [thread:$0]  %s110, 512, %s112, [#allocation15], 128, 128, 8
    $region45: #{forward_e2e.1} parent=1 // pred_fallthru
      _
    // Predicated region
    $region46: #{forward_e2e.1} parent=1 // pred_check
      _
    $region47: #{forward_e2e.1} parent=1 // pred_check_branch
      %119 = sbr.rel (0) target = $region49
    $region48: #{forward_e2e.1} parent=1 // pred_region
      _
    $region49: #{forward_e2e.1} parent=1 // pred_fallthru
      _
    // Predicated region
    $region50: #{forward_e2e.1} parent=1 // pred_check
      _
    $region51: #{forward_e2e.1} parent=1 // pred_check_branch
      %121 = sbr.rel (0) target = $region53
    $region52: #{forward_e2e.1} parent=1 // pred_region
      _
    $region53: #{forward_e2e.1} parent=1 // pred_fallthru
      _
    // Predicated region
    $region54: #{forward_e2e.1} parent=1 // pred_check
      _
    $region55: #{forward_e2e.1} parent=1 // pred_check_branch
      %123 = sbr.rel (0) target = $region57
    $region56: #{forward_e2e.1} parent=1 // pred_region
      _
    $region57: #{forward_e2e.1} parent=1 // pred_fallthru
      _
    // Predicated region
    $region58: #{forward_e2e.1} parent=1 // pred_check
      _
    $region59: #{forward_e2e.1} parent=1 // pred_check_branch
      %125 = sbr.rel (0) target = $region61
    $region60: #{forward_e2e.1} parent=1 // pred_region
      %127 = dma.done [#allocation5], 512
    $region61: #{forward_e2e.1} parent=1 // pred_fallthru
      _
    // Predicated region
    $region62: #{forward_e2e.1} parent=1 // pred_check
      _
    $region63: #{forward_e2e.1} parent=1 // pred_check_branch
      %129 = sbr.rel (0) target = $region65
    $region64: #{forward_e2e.1} parent=1 // pred_region
      %131 = dma.done [#allocation9], 512
    $region65: #{forward_e2e.1} parent=1 // pred_fallthru
      _
    // Predicated region
    $region66: #{forward_e2e.1} parent=1 // pred_check
      _
    $region67: #{forward_e2e.1} parent=1 // pred_check_branch
      %133 = sbr.rel (0) target = $region69
    $region68: #{forward_e2e.1} parent=1 // pred_region
      %135 = dma.done [#allocation9], 512
    $region69: #{forward_e2e.1} parent=1 // pred_fallthru
      _
    // Predicated region
    $region70: #{forward_e2e.1} parent=1 // pred_check
      _
    $region71: #{forward_e2e.1} parent=1 // pred_check_branch
      %137 = sbr.rel (0) target = $region73
    $region72: #{forward_e2e.1} parent=1 // pred_region
      %139 = dma.done [#allocation12], 512
    $region73: #{forward_e2e.1} parent=1 // pred_fallthru
      _
    // Predicated region
    $region74: #{forward_e2e.1} parent=1 // pred_check
      _
    $region75: #{forward_e2e.1} parent=1 // pred_check_branch
      %141 = sbr.rel (0) target = $region77
    $region76: #{forward_e2e.1} parent=1 // pred_region
      %143 = dma.done [#allocation12], 512
    $region77: #{forward_e2e.1} parent=1 // pred_fallthru
      _
    // Predicated region
    $region78: #{forward_e2e.1} parent=1 // pred_check
      _
    $region79: #{forward_e2e.1} parent=1 // pred_check_branch
      %145 = sbr.rel (0) target = $region81
    $region80: #{forward_e2e.1} parent=1 // pred_region
      %147 = dma.done [#allocation15], 512
    $region81: #{forward_e2e.1} parent=1 // pred_fallthru
      _
    %v148 = vld [vmem:[%s0] sm:$0xff]
    %v149 = vld [vmem:[%s1] sm:$0xff]
    %v150 = vld [vmem:[%s1 + $0x8] sm:$0xff]
    %v151 = vld [vmem:[%s1 + $0x10] sm:$0xff]
    %v152 = vld [vmem:[%s1 + $0x18] sm:$0xff]
    %v153 = vld [vmem:[%s3] sm:$0x1]
    %v155 = vperm.slane %v153, 0
    %vm157 = vcmask 261120
    %v159 = vsel %vm157, %v148, 0
    %161 = vmatpush.msra.mxu0 0.0
    %162 = vmatpush.msra.mxu0 0.0
    %163 = vmatpush.msra.mxu0 0.0
    %164 = vmatpush.msra.mxu0 0.0
    %165 = vmatpush.msra.mxu0 0.0
    %166 = vmatpush.msra.mxu0 0.0
    %167 = vmatpush.msra.mxu0 0.0
    %168 = vmatpush.msra.mxu0 0.0
    %169 = vmatpush.msra.mxu0 0.0
    %170 = vmatpush.msra.mxu0 0.0
    %171 = vmatpush.msra.mxu0 0.0
    %172 = vmatpush.msra.mxu0 0.0
    %173 = vmatpush.msra.mxu0 %v152
    %174 = vmatpush.msra.mxu0 %v151
    %175 = vmatpush.msra.mxu0 %v150
    %176 = vmatpush.msra.mxu0 %v149
    %177 = vmatmul.f32.gmra.mxu0 %v159
    %v178 = vpop.f32.mrf.mxu0
    %v179 = vadd.f32 %v155, %v178
    %180 = vdwg.mxu0
    %181 = vst [vmem:[#allocation2] sm:$0xff] %v179
    %v182 = vld [vmem:[#allocation4] sm:$0xff]
    %v183 = vld [vmem:[#allocation4 + $0x8] sm:$0xff]
    %v184 = vld [vmem:[#allocation4 + $0x10] sm:$0xff]
    %v185 = vld [vmem:[#allocation4 + $0x18] sm:$0xff]
    %v186 = vld [vmem:[#allocation2] sm:$0x1]
    %v188 = vsel %vm157, 0.0, 0
    %190 = vmatpush.msra.mxu0 0.0
    %191 = vmatpush.msra.mxu0 0.0
    %192 = vmatpush.msra.mxu0 0.0
    %193 = vmatpush.msra.mxu0 0.0
    %194 = vmatpush.msra.mxu0 0.0
    %195 = vmatpush.msra.mxu0 0.0
    %196 = vmatpush.msra.mxu0 0.0
    %197 = vmatpush.msra.mxu0 0.0
    %198 = vmatpush.msra.mxu0 0.0
    %199 = vmatpush.msra.mxu0 0.0
    %200 = vmatpush.msra.mxu0 0.0
    %201 = vmatpush.msra.mxu0 0.0
    %202 = vmatpush.msra.mxu0 %v185
    %203 = vmatpush.msra.mxu0 %v184
    %204 = vmatpush.msra.mxu0 %v183
    %205 = vmatpush.msra.mxu0 %v182
    %206 = vmatmul.f32.gmra.mxu0 %v188
    %v207 = vpop.f32.mrf.mxu0
    %v208 = vadd.f32 0.0, %v207
    %209 = vdwg.mxu0
    %v210 = vadd.f32 %v186, %v208
    %v211 = vxor.u32 %v210, 2147483648
    %v212 = vmul.f32 %v211, 1.442695
    %v213 = vpow.pop %v212
    %v214 = vadd.f32 %v213, 1.0
    %v215 = vrcp.pop %v214
    %v216 = vmul.f32 %v214, %v215
    %v217 = vsub.f32 1.0, %v216
    %v218 = vmul.f32 %v215, %v217
    %v219 = vadd.f32 %v215, %v218
    %vm220 = vweird.f32 %v214
    %vm221 = vweird.f32 %v215
    %vm222 = vmor %vm220, %vm221
    %v223 = vsel %vm222, %v215, %v219
    %v224 = vand.u32 2147483647, %v214
    %vm225 = vcmp.eq.f32.partialorder %v224, 8.507059e+37
    %v226 = vand.u32 %v214, 2147483648
    %v227 = vor.u32 1.1754944e-38, %v226
    %v228 = vsel %vm225, %v227, %v223
    %v229 = vmul.f32 1.0, %v228
    %v230 = vtanh.pop %v210
    %v231 = vmul.f32 %v229, 0.0
    %233 = vrot.lane.b32.xlu0 %v230, 64
    %v234 = vpop.permute.xlu0 %233
    %v236 = vmul.f32 %v229, %v234
    %238 = vrot.lane.b32.xlu0 %v236, 32
    %v239 = vpop.permute.xlu0 %238
    %v241 = vadd.f32 %v231, %v239
    %v242 = vtanh.pop %v241
    %244 = vrot.lane.b32.xlu0 %v242, 64
    %v245 = vpop.permute.xlu0 %244
    %v247 = vmul.f32 %v229, %v245
    %249 = vrot.lane.b32.xlu0 %v247, 32
    %v250 = vpop.permute.xlu0 %249
    %vm252 = vcmask 253952
    %253 = vst.msk [vmem:[#allocation3] sm:$0x1] %vm252, %v250
    %v254 = vld [vmem:[#allocation2 + $0x1] sm:$0x1]
    %v255 = vsel %vm157, %v250, 0
    %257 = vmatpush.msra.mxu0 0.0
    %258 = vmatpush.msra.mxu0 0.0
    %259 = vmatpush.msra.mxu0 0.0
    %260 = vmatpush.msra.mxu0 0.0
    %261 = vmatpush.msra.mxu0 0.0
    %262 = vmatpush.msra.mxu0 0.0
    %263 = vmatpush.msra.mxu0 0.0
    %264 = vmatpush.msra.mxu0 0.0
    %265 = vmatpush.msra.mxu0 0.0
    %266 = vmatpush.msra.mxu0 0.0
    %267 = vmatpush.msra.mxu0 0.0
    %268 = vmatpush.msra.mxu0 0.0
    %269 = vmatpush.msra.mxu0 %v185
    %270 = vmatpush.msra.mxu0 %v184
    %271 = vmatpush.msra.mxu0 %v183
    %272 = vmatpush.msra.mxu0 %v182
    %273 = vmatmul.f32.gmra.mxu0 %v255
    %v274 = vpop.f32.mrf.mxu0
    %v275 = vadd.f32 0.0, %v274
    %276 = vdwg.mxu0
    %v277 = vadd.f32 %v254, %v275
    %v278 = vxor.u32 %v277, 2147483648
    %v279 = vmul.f32 %v278, 1.442695
    %v280 = vpow.pop %v279
    %v281 = vadd.f32 %v280, 1.0
    %v282 = vrcp.pop %v281
    %v283 = vmul.f32 %v281, %v282
    %v284 = vsub.f32 1.0, %v283
    %v285 = vmul.f32 %v282, %v284
    %v286 = vadd.f32 %v282, %v285
    %vm287 = vweird.f32 %v281
    %vm288 = vweird.f32 %v282
    %vm289 = vmor %vm287, %vm288
    %v290 = vsel %vm289, %v282, %v286
    %v291 = vand.u32 2147483647, %v281
    %vm292 = vcmp.eq.f32.partialorder %v291, 8.507059e+37
    %v293 = vand.u32 %v281, 2147483648
    %v294 = vor.u32 1.1754944e-38, %v293
    %v295 = vsel %vm292, %v294, %v290
    %v296 = vmul.f32 1.0, %v295
    %v297 = vtanh.pop %v277
    %v298 = vmul.f32 %v296, %v241
    %300 = vrot.lane.b32.xlu0 %v297, 64
    %v301 = vpop.permute.xlu0 %300
    %v303 = vmul.f32 %v296, %v301
    %305 = vrot.lane.b32.xlu0 %v303, 32
    %v306 = vpop.permute.xlu0 %305
    %v308 = vadd.f32 %v298, %v306
    %v309 = vtanh.pop %v308
    %311 = vrot.lane.b32.xlu0 %v309, 64
    %v312 = vpop.permute.xlu0 %311
    %v314 = vmul.f32 %v296, %v312
    %316 = vrot.lane.b32.xlu0 %v314, 32
    %v317 = vpop.permute.xlu0 %316
    %319 = vst.msk [vmem:[#allocation3 + $0x1] sm:$0x1] %vm252, %v317
    %v320 = vld [vmem:[#allocation2 + $0x2] sm:$0x1]
    %v321 = vsel %vm157, %v317, 0
    %323 = vmatpush.msra.mxu0 0.0
    %324 = vmatpush.msra.mxu0 0.0
    %325 = vmatpush.msra.mxu0 0.0
    %326 = vmatpush.msra.mxu0 0.0
    %327 = vmatpush.msra.mxu0 0.0
    %328 = vmatpush.msra.mxu0 0.0
    %329 = vmatpush.msra.mxu0 0.0
    %330 = vmatpush.msra.mxu0 0.0
    %331 = vmatpush.msra.mxu0 0.0
    %332 = vmatpush.msra.mxu0 0.0
    %333 = vmatpush.msra.mxu0 0.0
    %334 = vmatpush.msra.mxu0 0.0
    %335 = vmatpush.msra.mxu0 %v185
    %336 = vmatpush.msra.mxu0 %v184
    %337 = vmatpush.msra.mxu0 %v183
    %338 = vmatpush.msra.mxu0 %v182
    %339 = vmatmul.f32.gmra.mxu0 %v321
    %v340 = vpop.f32.mrf.mxu0
    %v341 = vadd.f32 0.0, %v340
    %342 = vdwg.mxu0
    %v343 = vadd.f32 %v320, %v341
    %v344 = vxor.u32 %v343, 2147483648
    %v345 = vmul.f32 %v344, 1.442695
    %v346 = vpow.pop %v345
    %v347 = vadd.f32 %v346, 1.0
    %v348 = vrcp.pop %v347
    %v349 = vmul.f32 %v347, %v348
    %v350 = vsub.f32 1.0, %v349
    %v351 = vmul.f32 %v348, %v350
    %v352 = vadd.f32 %v348, %v351
    %vm353 = vweird.f32 %v347
    %vm354 = vweird.f32 %v348
    %vm355 = vmor %vm353, %vm354
    %v356 = vsel %vm355, %v348, %v352
    %v357 = vand.u32 2147483647, %v347
    %vm358 = vcmp.eq.f32.partialorder %v357, 8.507059e+37
    %v359 = vand.u32 %v347, 2147483648
    %v360 = vor.u32 1.1754944e-38, %v359
    %v361 = vsel %vm358, %v360, %v356
    %v362 = vmul.f32 1.0, %v361
    %v363 = vtanh.pop %v343
    %v364 = vmul.f32 %v362, %v308
    %366 = vrot.lane.b32.xlu0 %v363, 64
    %v367 = vpop.permute.xlu0 %366
    %v369 = vmul.f32 %v362, %v367
    %371 = vrot.lane.b32.xlu0 %v369, 32
    %v372 = vpop.permute.xlu0 %371
    %v374 = vadd.f32 %v364, %v372
    %v375 = vtanh.pop %v374
    %377 = vrot.lane.b32.xlu0 %v375, 64
    %v378 = vpop.permute.xlu0 %377
    %v380 = vmul.f32 %v362, %v378
    %382 = vrot.lane.b32.xlu0 %v380, 32
    %v383 = vpop.permute.xlu0 %382
    %385 = vst.msk [vmem:[#allocation3 + $0x2] sm:$0x1] %vm252, %v383
    %v386 = vld [vmem:[#allocation2 + $0x3] sm:$0x1]
    %v387 = vsel %vm157, %v383, 0
    %389 = vmatpush.msra.mxu0 0.0
    %390 = vmatpush.msra.mxu0 0.0
    %391 = vmatpush.msra.mxu0 0.0
    %392 = vmatpush.msra.mxu0 0.0
    %393 = vmatpush.msra.mxu0 0.0
    %394 = vmatpush.msra.mxu0 0.0
    %395 = vmatpush.msra.mxu0 0.0
    %396 = vmatpush.msra.mxu0 0.0
    %397 = vmatpush.msra.mxu0 0.0
    %398 = vmatpush.msra.mxu0 0.0
    %399 = vmatpush.msra.mxu0 0.0
    %400 = vmatpush.msra.mxu0 0.0
    %401 = vmatpush.msra.mxu0 %v185
    %402 = vmatpush.msra.mxu0 %v184
    %403 = vmatpush.msra.mxu0 %v183
    %404 = vmatpush.msra.mxu0 %v182
    %405 = vmatmul.f32.gmra.mxu0 %v387
    %v406 = vpop.f32.mrf.mxu0
    %v407 = vadd.f32 0.0, %v406
    %408 = vdwg.mxu0
    %v409 = vadd.f32 %v386, %v407
    %v410 = vxor.u32 %v409, 2147483648
    %v411 = vmul.f32 %v410, 1.442695
    %v412 = vpow.pop %v411
    %v413 = vadd.f32 %v412, 1.0
    %v414 = vrcp.pop %v413
    %v415 = vmul.f32 %v413, %v414
    %v416 = vsub.f32 1.0, %v415
    %v417 = vmul.f32 %v414, %v416
    %v418 = vadd.f32 %v414, %v417
    %vm419 = vweird.f32 %v413
    %vm420 = vweird.f32 %v414
    %vm421 = vmor %vm419, %vm420
    %v422 = vsel %vm421, %v414, %v418
    %v423 = vand.u32 2147483647, %v413
    %vm424 = vcmp.eq.f32.partialorder %v423, 8.507059e+37
    %v425 = vand.u32 %v413, 2147483648
    %v426 = vor.u32 1.1754944e-38, %v425
    %v427 = vsel %vm424, %v426, %v422
    %v428 = vmul.f32 1.0, %v427
    %v429 = vtanh.pop %v409
    %v430 = vmul.f32 %v428, %v374
    %432 = vrot.lane.b32.xlu0 %v429, 64
    %v433 = vpop.permute.xlu0 %432
    %v435 = vmul.f32 %v428, %v433
    %437 = vrot.lane.b32.xlu0 %v435, 32
    %v438 = vpop.permute.xlu0 %437
    %v440 = vadd.f32 %v430, %v438
    %v441 = vtanh.pop %v440
    %443 = vrot.lane.b32.xlu0 %v441, 64
    %v444 = vpop.permute.xlu0 %443
    %v446 = vmul.f32 %v428, %v444
    %448 = vrot.lane.b32.xlu0 %v446, 32
    %v449 = vpop.permute.xlu0 %448
    %451 = vst.msk [vmem:[#allocation3 + $0x3] sm:$0x1] %vm252, %v449
    %v452 = vld [vmem:[#allocation2 + $0x4] sm:$0x1]
    %v453 = vsel %vm157, %v449, 0
    %455 = vmatpush.msra.mxu0 0.0
    %456 = vmatpush.msra.mxu0 0.0
    %457 = vmatpush.msra.mxu0 0.0
    %458 = vmatpush.msra.mxu0 0.0
    %459 = vmatpush.msra.mxu0 0.0
    %460 = vmatpush.msra.mxu0 0.0
    %461 = vmatpush.msra.mxu0 0.0
    %462 = vmatpush.msra.mxu0 0.0
    %463 = vmatpush.msra.mxu0 0.0
    %464 = vmatpush.msra.mxu0 0.0
    %465 = vmatpush.msra.mxu0 0.0
    %466 = vmatpush.msra.mxu0 0.0
    %467 = vmatpush.msra.mxu0 %v185
    %468 = vmatpush.msra.mxu0 %v184
    %469 = vmatpush.msra.mxu0 %v183
    %470 = vmatpush.msra.mxu0 %v182
    %471 = vmatmul.f32.gmra.mxu0 %v453
    %v472 = vpop.f32.mrf.mxu0
    %v473 = vadd.f32 0.0, %v472
    %474 = vdwg.mxu0
    %v475 = vadd.f32 %v452, %v473
    %v476 = vxor.u32 %v475, 2147483648
    %v477 = vmul.f32 %v476, 1.442695
    %v478 = vpow.pop %v477
    %v479 = vadd.f32 %v478, 1.0
    %v480 = vrcp.pop %v479
    %v481 = vmul.f32 %v479, %v480
    %v482 = vsub.f32 1.0, %v481
    %v483 = vmul.f32 %v480, %v482
    %v484 = vadd.f32 %v480, %v483
    %vm485 = vweird.f32 %v479
    %vm486 = vweird.f32 %v480
    %vm487 = vmor %vm485, %vm486
    %v488 = vsel %vm487, %v480, %v484
    %v489 = vand.u32 2147483647, %v479
    %vm490 = vcmp.eq.f32.partialorder %v489, 8.507059e+37
    %v491 = vand.u32 %v479, 2147483648
    %v492 = vor.u32 1.1754944e-38, %v491
    %v493 = vsel %vm490, %v492, %v488
    %v494 = vmul.f32 1.0, %v493
    %v495 = vtanh.pop %v475
    %v496 = vmul.f32 %v494, %v440
    %498 = vrot.lane.b32.xlu0 %v495, 64
    %v499 = vpop.permute.xlu0 %498
    %v501 = vmul.f32 %v494, %v499
    %503 = vrot.lane.b32.xlu0 %v501, 32
    %v504 = vpop.permute.xlu0 %503
    %v506 = vadd.f32 %v496, %v504
    %v507 = vtanh.pop %v506
    %509 = vrot.lane.b32.xlu0 %v507, 64
    %v510 = vpop.permute.xlu0 %509
    %v512 = vmul.f32 %v494, %v510
    %514 = vrot.lane.b32.xlu0 %v512, 32
    %v515 = vpop.permute.xlu0 %514
    %517 = vst.msk [vmem:[#allocation3 + $0x4] sm:$0x1] %vm252, %v515
    %v518 = vld [vmem:[#allocation2 + $0x5] sm:$0x1]
    %v519 = vsel %vm157, %v515, 0
    %521 = vmatpush.msra.mxu0 0.0
    %522 = vmatpush.msra.mxu0 0.0
    %523 = vmatpush.msra.mxu0 0.0
    %524 = vmatpush.msra.mxu0 0.0
    %525 = vmatpush.msra.mxu0 0.0
    %526 = vmatpush.msra.mxu0 0.0
    %527 = vmatpush.msra.mxu0 0.0
    %528 = vmatpush.msra.mxu0 0.0
    %529 = vmatpush.msra.mxu0 0.0
    %530 = vmatpush.msra.mxu0 0.0
    %531 = vmatpush.msra.mxu0 0.0
    %532 = vmatpush.msra.mxu0 0.0
    %533 = vmatpush.msra.mxu0 %v185
    %534 = vmatpush.msra.mxu0 %v184
    %535 = vmatpush.msra.mxu0 %v183
    %536 = vmatpush.msra.mxu0 %v182
    %537 = vmatmul.f32.gmra.mxu0 %v519
    %v538 = vpop.f32.mrf.mxu0
    %v539 = vadd.f32 0.0, %v538
    %540 = vdwg.mxu0
    %v541 = vadd.f32 %v518, %v539
    %v542 = vxor.u32 %v541, 2147483648
    %v543 = vmul.f32 %v542, 1.442695
    %v544 = vpow.pop %v543
    %v545 = vadd.f32 %v544, 1.0
    %v546 = vrcp.pop %v545
    %v547 = vmul.f32 %v545, %v546
    %v548 = vsub.f32 1.0, %v547
    %v549 = vmul.f32 %v546, %v548
    %v550 = vadd.f32 %v546, %v549
    %vm551 = vweird.f32 %v545
    %vm552 = vweird.f32 %v546
    %vm553 = vmor %vm551, %vm552
    %v554 = vsel %vm553, %v546, %v550
    %v555 = vand.u32 2147483647, %v545
    %vm556 = vcmp.eq.f32.partialorder %v555, 8.507059e+37
    %v557 = vand.u32 %v545, 2147483648
    %v558 = vor.u32 1.1754944e-38, %v557
    %v559 = vsel %vm556, %v558, %v554
    %v560 = vmul.f32 1.0, %v559
    %v561 = vtanh.pop %v541
    %v562 = vmul.f32 %v560, %v506
    %564 = vrot.lane.b32.xlu0 %v561, 64
    %v565 = vpop.permute.xlu0 %564
    %v567 = vmul.f32 %v560, %v565
    %569 = vrot.lane.b32.xlu0 %v567, 32
    %v570 = vpop.permute.xlu0 %569
    %v572 = vadd.f32 %v562, %v570
    %v573 = vtanh.pop %v572
    %575 = vrot.lane.b32.xlu0 %v573, 64
    %v576 = vpop.permute.xlu0 %575
    %v578 = vmul.f32 %v560, %v576
    %580 = vrot.lane.b32.xlu0 %v578, 32
    %v581 = vpop.permute.xlu0 %580
    %583 = vst.msk [vmem:[#allocation3 + $0x5] sm:$0x1] %vm252, %v581
    %v584 = vld [vmem:[#allocation2 + $0x6] sm:$0x1]
    %v585 = vsel %vm157, %v581, 0
    %587 = vmatpush.msra.mxu0 0.0
    %588 = vmatpush.msra.mxu0 0.0
    %589 = vmatpush.msra.mxu0 0.0
    %590 = vmatpush.msra.mxu0 0.0
    %591 = vmatpush.msra.mxu0 0.0
    %592 = vmatpush.msra.mxu0 0.0
    %593 = vmatpush.msra.mxu0 0.0
    %594 = vmatpush.msra.mxu0 0.0
    %595 = vmatpush.msra.mxu0 0.0
    %596 = vmatpush.msra.mxu0 0.0
    %597 = vmatpush.msra.mxu0 0.0
    %598 = vmatpush.msra.mxu0 0.0
    %599 = vmatpush.msra.mxu0 %v185
    %600 = vmatpush.msra.mxu0 %v184
    %601 = vmatpush.msra.mxu0 %v183
    %602 = vmatpush.msra.mxu0 %v182
    %603 = vmatmul.f32.gmra.mxu0 %v585
    %v604 = vpop.f32.mrf.mxu0
    %v605 = vadd.f32 0.0, %v604
    %606 = vdwg.mxu0
    %v607 = vadd.f32 %v584, %v605
    %v608 = vxor.u32 %v607, 2147483648
    %v609 = vmul.f32 %v608, 1.442695
    %v610 = vpow.pop %v609
    %v611 = vadd.f32 %v610, 1.0
    %v612 = vrcp.pop %v611
    %v613 = vmul.f32 %v611, %v612
    %v614 = vsub.f32 1.0, %v613
    %v615 = vmul.f32 %v612, %v614
    %v616 = vadd.f32 %v612, %v615
    %vm617 = vweird.f32 %v611
    %vm618 = vweird.f32 %v612
    %vm619 = vmor %vm617, %vm618
    %v620 = vsel %vm619, %v612, %v616
    %v621 = vand.u32 2147483647, %v611
    %vm622 = vcmp.eq.f32.partialorder %v621, 8.507059e+37
    %v623 = vand.u32 %v611, 2147483648
    %v624 = vor.u32 1.1754944e-38, %v623
    %v625 = vsel %vm622, %v624, %v620
    %v626 = vmul.f32 1.0, %v625
    %v627 = vtanh.pop %v607
    %v628 = vmul.f32 %v626, %v572
    %630 = vrot.lane.b32.xlu0 %v627, 64
    %v631 = vpop.permute.xlu0 %630
    %v633 = vmul.f32 %v626, %v631
    %635 = vrot.lane.b32.xlu0 %v633, 32
    %v636 = vpop.permute.xlu0 %635
    %v638 = vadd.f32 %v628, %v636
    %v639 = vtanh.pop %v638
    %641 = vrot.lane.b32.xlu0 %v639, 64
    %v642 = vpop.permute.xlu0 %641
    %v644 = vmul.f32 %v626, %v642
    %646 = vrot.lane.b32.xlu0 %v644, 32
    %v647 = vpop.permute.xlu0 %646
    %649 = vst.msk [vmem:[#allocation3 + $0x6] sm:$0x1] %vm252, %v647
    %v650 = vld [vmem:[#allocation2 + $0x7] sm:$0x1]
    %v651 = vsel %vm157, %v647, 0
    %653 = vmatpush.msra.mxu0 0.0
    %654 = vmatpush.msra.mxu0 0.0
    %655 = vmatpush.msra.mxu0 0.0
    %656 = vmatpush.msra.mxu0 0.0
    %657 = vmatpush.msra.mxu0 0.0
    %658 = vmatpush.msra.mxu0 0.0
    %659 = vmatpush.msra.mxu0 0.0
    %660 = vmatpush.msra.mxu0 0.0
    %661 = vmatpush.msra.mxu0 0.0
    %662 = vmatpush.msra.mxu0 0.0
    %663 = vmatpush.msra.mxu0 0.0
    %664 = vmatpush.msra.mxu0 0.0
    %665 = vmatpush.msra.mxu0 %v185
    %666 = vmatpush.msra.mxu0 %v184
    %667 = vmatpush.msra.mxu0 %v183
    %668 = vmatpush.msra.mxu0 %v182
    %669 = vmatmul.f32.gmra.mxu0 %v651
    %v670 = vpop.f32.mrf.mxu0
    %v671 = vadd.f32 0.0, %v670
    %672 = vdwg.mxu0
    %v673 = vadd.f32 %v650, %v671
    %v674 = vxor.u32 %v673, 2147483648
    %v675 = vmul.f32 %v674, 1.442695
    %v676 = vpow.pop %v675
    %v677 = vadd.f32 %v676, 1.0
    %v678 = vrcp.pop %v677
    %v679 = vmul.f32 %v677, %v678
    %v680 = vsub.f32 1.0, %v679
    %v681 = vmul.f32 %v678, %v680
    %v682 = vadd.f32 %v678, %v681
    %vm683 = vweird.f32 %v677
    %vm684 = vweird.f32 %v678
    %vm685 = vmor %vm683, %vm684
    %v686 = vsel %vm685, %v678, %v682
    %v687 = vand.u32 2147483647, %v677
    %vm688 = vcmp.eq.f32.partialorder %v687, 8.507059e+37
    %v689 = vand.u32 %v677, 2147483648
    %v690 = vor.u32 1.1754944e-38, %v689
    %v691 = vsel %vm688, %v690, %v686
    %v692 = vmul.f32 1.0, %v691
    %v693 = vtanh.pop %v673
    %v694 = vmul.f32 %v692, %v638
    %696 = vrot.lane.b32.xlu0 %v693, 64
    %v697 = vpop.permute.xlu0 %696
    %v699 = vmul.f32 %v692, %v697
    %701 = vrot.lane.b32.xlu0 %v699, 32
    %v702 = vpop.permute.xlu0 %701
    %v704 = vadd.f32 %v694, %v702
    %v705 = vtanh.pop %v704
    %707 = vrot.lane.b32.xlu0 %v705, 64
    %v708 = vpop.permute.xlu0 %707
    %v710 = vmul.f32 %v692, %v708
    %712 = vrot.lane.b32.xlu0 %v710, 32
    %v713 = vpop.permute.xlu0 %712
    %715 = vst.msk [vmem:[#allocation3 + $0x7] sm:$0x1] %vm252, %v713
    %v716 = vld [vmem:[#allocation3] sm:$0xff]
    %v717 = vld [vmem:[#allocation8] sm:$0xff]
    %v718 = vld [vmem:[#allocation8 + $0x8] sm:$0xff]
    %v719 = vld [vmem:[#allocation8 + $0x10] sm:$0xff]
    %v720 = vld [vmem:[#allocation8 + $0x18] sm:$0xff]
    %v721 = vld [vmem:[%s6] sm:$0x1]
    %v723 = vperm.slane %v721, 0
    %v726 = vsel %vm157, %v716, 0
    %728 = vmatpush.msra.mxu0 0.0
    %729 = vmatpush.msra.mxu0 0.0
    %730 = vmatpush.msra.mxu0 0.0
    %731 = vmatpush.msra.mxu0 0.0
    %732 = vmatpush.msra.mxu0 0.0
    %733 = vmatpush.msra.mxu0 0.0
    %734 = vmatpush.msra.mxu0 0.0
    %735 = vmatpush.msra.mxu0 0.0
    %736 = vmatpush.msra.mxu0 0.0
    %737 = vmatpush.msra.mxu0 0.0
    %738 = vmatpush.msra.mxu0 0.0
    %739 = vmatpush.msra.mxu0 0.0
    %740 = vmatpush.msra.mxu0 %v720
    %741 = vmatpush.msra.mxu0 %v719
    %742 = vmatpush.msra.mxu0 %v718
    %743 = vmatpush.msra.mxu0 %v717
    %744 = vmatmul.f32.gmra.mxu0 %v726
    %v745 = vpop.f32.mrf.mxu0
    %v746 = vadd.f32 %v723, %v745
    %747 = vdwg.mxu0
    %748 = vst [vmem:[#allocation2] sm:$0xff] %v746
    %v749 = vld [vmem:[#allocation10] sm:$0xff]
    %v750 = vld [vmem:[#allocation10 + $0x8] sm:$0xff]
    %v751 = vld [vmem:[#allocation10 + $0x10] sm:$0xff]
    %v752 = vld [vmem:[#allocation10 + $0x18] sm:$0xff]
    %v753 = vld [vmem:[#allocation2] sm:$0x1]
    %v754 = vsel %vm157, %v713, 0
    %756 = vmatpush.msra.mxu0 0.0
    %757 = vmatpush.msra.mxu0 0.0
    %758 = vmatpush.msra.mxu0 0.0
    %759 = vmatpush.msra.mxu0 0.0
    %760 = vmatpush.msra.mxu0 0.0
    %761 = vmatpush.msra.mxu0 0.0
    %762 = vmatpush.msra.mxu0 0.0
    %763 = vmatpush.msra.mxu0 0.0
    %764 = vmatpush.msra.mxu0 0.0
    %765 = vmatpush.msra.mxu0 0.0
    %766 = vmatpush.msra.mxu0 0.0
    %767 = vmatpush.msra.mxu0 0.0
    %768 = vmatpush.msra.mxu0 %v752
    %769 = vmatpush.msra.mxu0 %v751
    %770 = vmatpush.msra.mxu0 %v750
    %771 = vmatpush.msra.mxu0 %v749
    %772 = vmatmul.f32.gmra.mxu0 %v754
    %v773 = vpop.f32.mrf.mxu0
    %v774 = vadd.f32 0.0, %v773
    %775 = vdwg.mxu0
    %v776 = vadd.f32 %v753, %v774
    %v777 = vxor.u32 %v776, 2147483648
    %v778 = vmul.f32 %v777, 1.442695
    %v779 = vpow.pop %v778
    %v780 = vadd.f32 %v779, 1.0
    %v781 = vrcp.pop %v780
    %v782 = vmul.f32 %v780, %v781
    %v783 = vsub.f32 1.0, %v782
    %v784 = vmul.f32 %v781, %v783
    %v785 = vadd.f32 %v781, %v784
    %vm786 = vweird.f32 %v780
    %vm787 = vweird.f32 %v781
    %vm788 = vmor %vm786, %vm787
    %v789 = vsel %vm788, %v781, %v785
    %v790 = vand.u32 2147483647, %v780
    %vm791 = vcmp.eq.f32.partialorder %v790, 8.507059e+37
    %v792 = vand.u32 %v780, 2147483648
    %v793 = vor.u32 1.1754944e-38, %v792
    %v794 = vsel %vm791, %v793, %v789
    %v795 = vmul.f32 1.0, %v794
    %v796 = vtanh.pop %v776
    %v797 = vmul.f32 %v795, %v704
    %799 = vrot.lane.b32.xlu0 %v796, 64
    %v800 = vpop.permute.xlu0 %799
    %v802 = vmul.f32 %v795, %v800
    %804 = vrot.lane.b32.xlu0 %v802, 32
    %v805 = vpop.permute.xlu0 %804
    %v807 = vadd.f32 %v797, %v805
    %v808 = vtanh.pop %v807
    %810 = vrot.lane.b32.xlu0 %v808, 64
    %v811 = vpop.permute.xlu0 %810
    %v813 = vmul.f32 %v795, %v811
    %815 = vrot.lane.b32.xlu0 %v813, 32
    %v816 = vpop.permute.xlu0 %815
    %818 = vst.msk [vmem:[#allocation17] sm:$0x1] %vm252, %v816
    %v819 = vld [vmem:[#allocation2 + $0x1] sm:$0x1]
    %v820 = vsel %vm157, %v816, 0
    %822 = vmatpush.msra.mxu0 0.0
    %823 = vmatpush.msra.mxu0 0.0
    %824 = vmatpush.msra.mxu0 0.0
    %825 = vmatpush.msra.mxu0 0.0
    %826 = vmatpush.msra.mxu0 0.0
    %827 = vmatpush.msra.mxu0 0.0
    %828 = vmatpush.msra.mxu0 0.0
    %829 = vmatpush.msra.mxu0 0.0
    %830 = vmatpush.msra.mxu0 0.0
    %831 = vmatpush.msra.mxu0 0.0
    %832 = vmatpush.msra.mxu0 0.0
    %833 = vmatpush.msra.mxu0 0.0
    %834 = vmatpush.msra.mxu0 %v752
    %835 = vmatpush.msra.mxu0 %v751
    %836 = vmatpush.msra.mxu0 %v750
    %837 = vmatpush.msra.mxu0 %v749
    %838 = vmatmul.f32.gmra.mxu0 %v820
    %v839 = vpop.f32.mrf.mxu0
    %v840 = vadd.f32 0.0, %v839
    %841 = vdwg.mxu0
    %v842 = vadd.f32 %v819, %v840
    %v843 = vxor.u32 %v842, 2147483648
    %v844 = vmul.f32 %v843, 1.442695
    %v845 = vpow.pop %v844
    %v846 = vadd.f32 %v845, 1.0
    %v847 = vrcp.pop %v846
    %v848 = vmul.f32 %v846, %v847
    %v849 = vsub.f32 1.0, %v848
    %v850 = vmul.f32 %v847, %v849
    %v851 = vadd.f32 %v847, %v850
    %vm852 = vweird.f32 %v846
    %vm853 = vweird.f32 %v847
    %vm854 = vmor %vm852, %vm853
    %v855 = vsel %vm854, %v847, %v851
    %v856 = vand.u32 2147483647, %v846
    %vm857 = vcmp.eq.f32.partialorder %v856, 8.507059e+37
    %v858 = vand.u32 %v846, 2147483648
    %v859 = vor.u32 1.1754944e-38, %v858
    %v860 = vsel %vm857, %v859, %v855
    %v861 = vmul.f32 1.0, %v860
    %v862 = vtanh.pop %v842
    %v863 = vmul.f32 %v861, %v807
    %865 = vrot.lane.b32.xlu0 %v862, 64
    %v866 = vpop.permute.xlu0 %865
    %v868 = vmul.f32 %v861, %v866
    %870 = vrot.lane.b32.xlu0 %v868, 32
    %v871 = vpop.permute.xlu0 %870
    %v873 = vadd.f32 %v863, %v871
    %v874 = vtanh.pop %v873
    %876 = vrot.lane.b32.xlu0 %v874, 64
    %v877 = vpop.permute.xlu0 %876
    %v879 = vmul.f32 %v861, %v877
    %881 = vrot.lane.b32.xlu0 %v879, 32
    %v882 = vpop.permute.xlu0 %881
    %884 = vst.msk [vmem:[#allocation17 + $0x1] sm:$0x1] %vm252, %v882
    %v885 = vld [vmem:[#allocation2 + $0x2] sm:$0x1]
    %v886 = vsel %vm157, %v882, 0
    %888 = vmatpush.msra.mxu0 0.0
    %889 = vmatpush.msra.mxu0 0.0
    %890 = vmatpush.msra.mxu0 0.0
    %891 = vmatpush.msra.mxu0 0.0
    %892 = vmatpush.msra.mxu0 0.0
    %893 = vmatpush.msra.mxu0 0.0
    %894 = vmatpush.msra.mxu0 0.0
    %895 = vmatpush.msra.mxu0 0.0
    %896 = vmatpush.msra.mxu0 0.0
    %897 = vmatpush.msra.mxu0 0.0
    %898 = vmatpush.msra.mxu0 0.0
    %899 = vmatpush.msra.mxu0 0.0
    %900 = vmatpush.msra.mxu0 %v752
    %901 = vmatpush.msra.mxu0 %v751
    %902 = vmatpush.msra.mxu0 %v750
    %903 = vmatpush.msra.mxu0 %v749
    %904 = vmatmul.f32.gmra.mxu0 %v886
    %v905 = vpop.f32.mrf.mxu0
    %v906 = vadd.f32 0.0, %v905
    %907 = vdwg.mxu0
    %v908 = vadd.f32 %v885, %v906
    %v909 = vxor.u32 %v908, 2147483648
    %v910 = vmul.f32 %v909, 1.442695
    %v911 = vpow.pop %v910
    %v912 = vadd.f32 %v911, 1.0
    %v913 = vrcp.pop %v912
    %v914 = vmul.f32 %v912, %v913
    %v915 = vsub.f32 1.0, %v914
    %v916 = vmul.f32 %v913, %v915
    %v917 = vadd.f32 %v913, %v916
    %vm918 = vweird.f32 %v912
    %vm919 = vweird.f32 %v913
    %vm920 = vmor %vm918, %vm919
    %v921 = vsel %vm920, %v913, %v917
    %v922 = vand.u32 2147483647, %v912
    %vm923 = vcmp.eq.f32.partialorder %v922, 8.507059e+37
    %v924 = vand.u32 %v912, 2147483648
    %v925 = vor.u32 1.1754944e-38, %v924
    %v926 = vsel %vm923, %v925, %v921
    %v927 = vmul.f32 1.0, %v926
    %v928 = vtanh.pop %v908
    %v929 = vmul.f32 %v927, %v873
    %931 = vrot.lane.b32.xlu0 %v928, 64
    %v932 = vpop.permute.xlu0 %931
    %v934 = vmul.f32 %v927, %v932
    %936 = vrot.lane.b32.xlu0 %v934, 32
    %v937 = vpop.permute.xlu0 %936
    %v939 = vadd.f32 %v929, %v937
    %v940 = vtanh.pop %v939
    %942 = vrot.lane.b32.xlu0 %v940, 64
    %v943 = vpop.permute.xlu0 %942
    %v945 = vmul.f32 %v927, %v943
    %947 = vrot.lane.b32.xlu0 %v945, 32
    %v948 = vpop.permute.xlu0 %947
    %950 = vst.msk [vmem:[#allocation17 + $0x2] sm:$0x1] %vm252, %v948
    %v951 = vld [vmem:[#allocation2 + $0x3] sm:$0x1]
    %v952 = vsel %vm157, %v948, 0
    %954 = vmatpush.msra.mxu0 0.0
    %955 = vmatpush.msra.mxu0 0.0
    %956 = vmatpush.msra.mxu0 0.0
    %957 = vmatpush.msra.mxu0 0.0
    %958 = vmatpush.msra.mxu0 0.0
    %959 = vmatpush.msra.mxu0 0.0
    %960 = vmatpush.msra.mxu0 0.0
    %961 = vmatpush.msra.mxu0 0.0
    %962 = vmatpush.msra.mxu0 0.0
    %963 = vmatpush.msra.mxu0 0.0
    %964 = vmatpush.msra.mxu0 0.0
    %965 = vmatpush.msra.mxu0 0.0
    %966 = vmatpush.msra.mxu0 %v752
    %967 = vmatpush.msra.mxu0 %v751
    %968 = vmatpush.msra.mxu0 %v750
    %969 = vmatpush.msra.mxu0 %v749
    %970 = vmatmul.f32.gmra.mxu0 %v952
    %v971 = vpop.f32.mrf.mxu0
    %v972 = vadd.f32 0.0, %v971
    %973 = vdwg.mxu0
    %v974 = vadd.f32 %v951, %v972
    %v975 = vxor.u32 %v974, 2147483648
    %v976 = vmul.f32 %v975, 1.442695
    %v977 = vpow.pop %v976
    %v978 = vadd.f32 %v977, 1.0
    %v979 = vrcp.pop %v978
    %v980 = vmul.f32 %v978, %v979
    %v981 = vsub.f32 1.0, %v980
    %v982 = vmul.f32 %v979, %v981
    %v983 = vadd.f32 %v979, %v982
    %vm984 = vweird.f32 %v978
    %vm985 = vweird.f32 %v979
    %vm986 = vmor %vm984, %vm985
    %v987 = vsel %vm986, %v979, %v983
    %v988 = vand.u32 2147483647, %v978
    %vm989 = vcmp.eq.f32.partialorder %v988, 8.507059e+37
    %v990 = vand.u32 %v978, 2147483648
    %v991 = vor.u32 1.1754944e-38, %v990
    %v992 = vsel %vm989, %v991, %v987
    %v993 = vmul.f32 1.0, %v992
    %v994 = vtanh.pop %v974
    %v995 = vmul.f32 %v993, %v939
    %997 = vrot.lane.b32.xlu0 %v994, 64
    %v998 = vpop.permute.xlu0 %997
    %v1000 = vmul.f32 %v993, %v998
    %1002 = vrot.lane.b32.xlu0 %v1000, 32
    %v1003 = vpop.permute.xlu0 %1002
    %v1005 = vadd.f32 %v995, %v1003
    %v1006 = vtanh.pop %v1005
    %1008 = vrot.lane.b32.xlu0 %v1006, 64
    %v1009 = vpop.permute.xlu0 %1008
    %v1011 = vmul.f32 %v993, %v1009
    %1013 = vrot.lane.b32.xlu0 %v1011, 32
    %v1014 = vpop.permute.xlu0 %1013
    %1016 = vst.msk [vmem:[#allocation17 + $0x3] sm:$0x1] %vm252, %v1014
    %v1017 = vld [vmem:[#allocation2 + $0x4] sm:$0x1]
    %v1018 = vsel %vm157, %v1014, 0
    %1020 = vmatpush.msra.mxu0 0.0
    %1021 = vmatpush.msra.mxu0 0.0
    %1022 = vmatpush.msra.mxu0 0.0
    %1023 = vmatpush.msra.mxu0 0.0
    %1024 = vmatpush.msra.mxu0 0.0
    %1025 = vmatpush.msra.mxu0 0.0
    %1026 = vmatpush.msra.mxu0 0.0
    %1027 = vmatpush.msra.mxu0 0.0
    %1028 = vmatpush.msra.mxu0 0.0
    %1029 = vmatpush.msra.mxu0 0.0
    %1030 = vmatpush.msra.mxu0 0.0
    %1031 = vmatpush.msra.mxu0 0.0
    %1032 = vmatpush.msra.mxu0 %v752
    %1033 = vmatpush.msra.mxu0 %v751
    %1034 = vmatpush.msra.mxu0 %v750
    %1035 = vmatpush.msra.mxu0 %v749
    %1036 = vmatmul.f32.gmra.mxu0 %v1018
    %v1037 = vpop.f32.mrf.mxu0
    %v1038 = vadd.f32 0.0, %v1037
    %1039 = vdwg.mxu0
    %v1040 = vadd.f32 %v1017, %v1038
    %v1041 = vxor.u32 %v1040, 2147483648
    %v1042 = vmul.f32 %v1041, 1.442695
    %v1043 = vpow.pop %v1042
    %v1044 = vadd.f32 %v1043, 1.0
    %v1045 = vrcp.pop %v1044
    %v1046 = vmul.f32 %v1044, %v1045
    %v1047 = vsub.f32 1.0, %v1046
    %v1048 = vmul.f32 %v1045, %v1047
    %v1049 = vadd.f32 %v1045, %v1048
    %vm1050 = vweird.f32 %v1044
    %vm1051 = vweird.f32 %v1045
    %vm1052 = vmor %vm1050, %vm1051
    %v1053 = vsel %vm1052, %v1045, %v1049
    %v1054 = vand.u32 2147483647, %v1044
    %vm1055 = vcmp.eq.f32.partialorder %v1054, 8.507059e+37
    %v1056 = vand.u32 %v1044, 2147483648
    %v1057 = vor.u32 1.1754944e-38, %v1056
    %v1058 = vsel %vm1055, %v1057, %v1053
    %v1059 = vmul.f32 1.0, %v1058
    %v1060 = vtanh.pop %v1040
    %v1061 = vmul.f32 %v1059, %v1005
    %1063 = vrot.lane.b32.xlu0 %v1060, 64
    %v1064 = vpop.permute.xlu0 %1063
    %v1066 = vmul.f32 %v1059, %v1064
    %1068 = vrot.lane.b32.xlu0 %v1066, 32
    %v1069 = vpop.permute.xlu0 %1068
    %v1071 = vadd.f32 %v1061, %v1069
    %v1072 = vtanh.pop %v1071
    %1074 = vrot.lane.b32.xlu0 %v1072, 64
    %v1075 = vpop.permute.xlu0 %1074
    %v1077 = vmul.f32 %v1059, %v1075
    %1079 = vrot.lane.b32.xlu0 %v1077, 32
    %v1080 = vpop.permute.xlu0 %1079
    %1082 = vst.msk [vmem:[#allocation17 + $0x4] sm:$0x1] %vm252, %v1080
    %v1083 = vld [vmem:[#allocation2 + $0x5] sm:$0x1]
    %v1084 = vsel %vm157, %v1080, 0
    %1086 = vmatpush.msra.mxu0 0.0
    %1087 = vmatpush.msra.mxu0 0.0
    %1088 = vmatpush.msra.mxu0 0.0
    %1089 = vmatpush.msra.mxu0 0.0
    %1090 = vmatpush.msra.mxu0 0.0
    %1091 = vmatpush.msra.mxu0 0.0
    %1092 = vmatpush.msra.mxu0 0.0
    %1093 = vmatpush.msra.mxu0 0.0
    %1094 = vmatpush.msra.mxu0 0.0
    %1095 = vmatpush.msra.mxu0 0.0
    %1096 = vmatpush.msra.mxu0 0.0
    %1097 = vmatpush.msra.mxu0 0.0
    %1098 = vmatpush.msra.mxu0 %v752
    %1099 = vmatpush.msra.mxu0 %v751
    %1100 = vmatpush.msra.mxu0 %v750
    %1101 = vmatpush.msra.mxu0 %v749
    %1102 = vmatmul.f32.gmra.mxu0 %v1084
    %v1103 = vpop.f32.mrf.mxu0
    %v1104 = vadd.f32 0.0, %v1103
    %1105 = vdwg.mxu0
    %v1106 = vadd.f32 %v1083, %v1104
    %v1107 = vxor.u32 %v1106, 2147483648
    %v1108 = vmul.f32 %v1107, 1.442695
    %v1109 = vpow.pop %v1108
    %v1110 = vadd.f32 %v1109, 1.0
    %v1111 = vrcp.pop %v1110
    %v1112 = vmul.f32 %v1110, %v1111
    %v1113 = vsub.f32 1.0, %v1112
    %v1114 = vmul.f32 %v1111, %v1113
    %v1115 = vadd.f32 %v1111, %v1114
    %vm1116 = vweird.f32 %v1110
    %vm1117 = vweird.f32 %v1111
    %vm1118 = vmor %vm1116, %vm1117
    %v1119 = vsel %vm1118, %v1111, %v1115
    %v1120 = vand.u32 2147483647, %v1110
    %vm1121 = vcmp.eq.f32.partialorder %v1120, 8.507059e+37
    %v1122 = vand.u32 %v1110, 2147483648
    %v1123 = vor.u32 1.1754944e-38, %v1122
    %v1124 = vsel %vm1121, %v1123, %v1119
    %v1125 = vmul.f32 1.0, %v1124
    %v1126 = vtanh.pop %v1106
    %v1127 = vmul.f32 %v1125, %v1071
    %1129 = vrot.lane.b32.xlu0 %v1126, 64
    %v1130 = vpop.permute.xlu0 %1129
    %v1132 = vmul.f32 %v1125, %v1130
    %1134 = vrot.lane.b32.xlu0 %v1132, 32
    %v1135 = vpop.permute.xlu0 %1134
    %v1137 = vadd.f32 %v1127, %v1135
    %v1138 = vtanh.pop %v1137
    %1140 = vrot.lane.b32.xlu0 %v1138, 64
    %v1141 = vpop.permute.xlu0 %1140
    %v1143 = vmul.f32 %v1125, %v1141
    %1145 = vrot.lane.b32.xlu0 %v1143, 32
    %v1146 = vpop.permute.xlu0 %1145
    %1148 = vst.msk [vmem:[#allocation17 + $0x5] sm:$0x1] %vm252, %v1146
    %v1149 = vld [vmem:[#allocation2 + $0x6] sm:$0x1]
    %v1150 = vsel %vm157, %v1146, 0
    %1152 = vmatpush.msra.mxu0 0.0
    %1153 = vmatpush.msra.mxu0 0.0
    %1154 = vmatpush.msra.mxu0 0.0
    %1155 = vmatpush.msra.mxu0 0.0
    %1156 = vmatpush.msra.mxu0 0.0
    %1157 = vmatpush.msra.mxu0 0.0
    %1158 = vmatpush.msra.mxu0 0.0
    %1159 = vmatpush.msra.mxu0 0.0
    %1160 = vmatpush.msra.mxu0 0.0
    %1161 = vmatpush.msra.mxu0 0.0
    %1162 = vmatpush.msra.mxu0 0.0
    %1163 = vmatpush.msra.mxu0 0.0
    %1164 = vmatpush.msra.mxu0 %v752
    %1165 = vmatpush.msra.mxu0 %v751
    %1166 = vmatpush.msra.mxu0 %v750
    %1167 = vmatpush.msra.mxu0 %v749
    %1168 = vmatmul.f32.gmra.mxu0 %v1150
    %v1169 = vpop.f32.mrf.mxu0
    %v1170 = vadd.f32 0.0, %v1169
    %1171 = vdwg.mxu0
    %v1172 = vadd.f32 %v1149, %v1170
    %v1173 = vxor.u32 %v1172, 2147483648
    %v1174 = vmul.f32 %v1173, 1.442695
    %v1175 = vpow.pop %v1174
    %v1176 = vadd.f32 %v1175, 1.0
    %v1177 = vrcp.pop %v1176
    %v1178 = vmul.f32 %v1176, %v1177
    %v1179 = vsub.f32 1.0, %v1178
    %v1180 = vmul.f32 %v1177, %v1179
    %v1181 = vadd.f32 %v1177, %v1180
    %vm1182 = vweird.f32 %v1176
    %vm1183 = vweird.f32 %v1177
    %vm1184 = vmor %vm1182, %vm1183
    %v1185 = vsel %vm1184, %v1177, %v1181
    %v1186 = vand.u32 2147483647, %v1176
    %vm1187 = vcmp.eq.f32.partialorder %v1186, 8.507059e+37
    %v1188 = vand.u32 %v1176, 2147483648
    %v1189 = vor.u32 1.1754944e-38, %v1188
    %v1190 = vsel %vm1187, %v1189, %v1185
    %v1191 = vmul.f32 1.0, %v1190
    %v1192 = vtanh.pop %v1172
    %v1193 = vmul.f32 %v1191, %v1137
    %1195 = vrot.lane.b32.xlu0 %v1192, 64
    %v1196 = vpop.permute.xlu0 %1195
    %v1198 = vmul.f32 %v1191, %v1196
    %1200 = vrot.lane.b32.xlu0 %v1198, 32
    %v1201 = vpop.permute.xlu0 %1200
    %v1203 = vadd.f32 %v1193, %v1201
    %v1204 = vtanh.pop %v1203
    %1206 = vrot.lane.b32.xlu0 %v1204, 64
    %v1207 = vpop.permute.xlu0 %1206
    %v1209 = vmul.f32 %v1191, %v1207
    %1211 = vrot.lane.b32.xlu0 %v1209, 32
    %v1212 = vpop.permute.xlu0 %1211
    %1214 = vst.msk [vmem:[#allocation17 + $0x6] sm:$0x1] %vm252, %v1212
    %v1215 = vld [vmem:[#allocation2 + $0x7] sm:$0x1]
    %v1216 = vsel %vm157, %v1212, 0
    %1218 = vmatpush.msra.mxu0 0.0
    %1219 = vmatpush.msra.mxu0 0.0
    %1220 = vmatpush.msra.mxu0 0.0
    %1221 = vmatpush.msra.mxu0 0.0
    %1222 = vmatpush.msra.mxu0 0.0
    %1223 = vmatpush.msra.mxu0 0.0
    %1224 = vmatpush.msra.mxu0 0.0
    %1225 = vmatpush.msra.mxu0 0.0
    %1226 = vmatpush.msra.mxu0 0.0
    %1227 = vmatpush.msra.mxu0 0.0
    %1228 = vmatpush.msra.mxu0 0.0
    %1229 = vmatpush.msra.mxu0 0.0
    %1230 = vmatpush.msra.mxu0 %v752
    %1231 = vmatpush.msra.mxu0 %v751
    %1232 = vmatpush.msra.mxu0 %v750
    %1233 = vmatpush.msra.mxu0 %v749
    %1234 = vmatmul.f32.gmra.mxu0 %v1216
    %v1235 = vpop.f32.mrf.mxu0
    %v1236 = vadd.f32 0.0, %v1235
    %1237 = vdwg.mxu0
    %v1238 = vadd.f32 %v1215, %v1236
    %v1239 = vxor.u32 %v1238, 2147483648
    %v1240 = vmul.f32 %v1239, 1.442695
    %v1241 = vpow.pop %v1240
    %v1242 = vadd.f32 %v1241, 1.0
    %v1243 = vrcp.pop %v1242
    %v1244 = vmul.f32 %v1242, %v1243
    %v1245 = vsub.f32 1.0, %v1244
    %v1246 = vmul.f32 %v1243, %v1245
    %v1247 = vadd.f32 %v1243, %v1246
    %vm1248 = vweird.f32 %v1242
    %vm1249 = vweird.f32 %v1243
    %vm1250 = vmor %vm1248, %vm1249
    %v1251 = vsel %vm1250, %v1243, %v1247
    %v1252 = vand.u32 2147483647, %v1242
    %vm1253 = vcmp.eq.f32.partialorder %v1252, 8.507059e+37
    %v1254 = vand.u32 %v1242, 2147483648
    %v1255 = vor.u32 1.1754944e-38, %v1254
    %v1256 = vsel %vm1253, %v1255, %v1251
    %v1257 = vmul.f32 1.0, %v1256
    %v1258 = vtanh.pop %v1238
    %v1259 = vmul.f32 %v1257, %v1203
    %1261 = vrot.lane.b32.xlu0 %v1258, 64
    %v1262 = vpop.permute.xlu0 %1261
    %v1264 = vmul.f32 %v1257, %v1262
    %1266 = vrot.lane.b32.xlu0 %v1264, 32
    %v1267 = vpop.permute.xlu0 %1266
    %v1269 = vadd.f32 %v1259, %v1267
    %v1270 = vtanh.pop %v1269
    %1272 = vrot.lane.b32.xlu0 %v1270, 64
    %v1273 = vpop.permute.xlu0 %1272
    %v1275 = vmul.f32 %v1257, %v1273
    %1277 = vrot.lane.b32.xlu0 %v1275, 32
    %v1278 = vpop.permute.xlu0 %1277
    %1280 = vst.msk [vmem:[#allocation17 + $0x7] sm:$0x1] %vm252, %v1278
    %1281 = vst.msk [vmem:[#allocation18] sm:$0x1] %vm252, %v1278
    %1283 = vrot.lane.b32.xlu0 %v1269, 96
    %v1284 = vpop.permute.xlu0 %1283
    %1286 = vst.msk [vmem:[#allocation20] sm:$0x1] %vm252, %v1284
    %v1287 = vld [vmem:[#allocation17] sm:$0xff]
    %v1288 = vld [vmem:[#allocation13] sm:$0xff]
    %v1289 = vld [vmem:[#allocation13 + $0x8] sm:$0xff]
    %v1290 = vld [vmem:[#allocation13 + $0x10] sm:$0xff]
    %v1291 = vld [vmem:[#allocation13 + $0x18] sm:$0xff]
    %v1293 = vsel %vm157, %v1287, 0
    %1295 = vmatpush.msra.mxu0 0.0
    %1296 = vmatpush.msra.mxu0 0.0
    %1297 = vmatpush.msra.mxu0 0.0
    %1298 = vmatpush.msra.mxu0 0.0
    %1299 = vmatpush.msra.mxu0 0.0
    %1300 = vmatpush.msra.mxu0 0.0
    %1301 = vmatpush.msra.mxu0 0.0
    %1302 = vmatpush.msra.mxu0 0.0
    %1303 = vmatpush.msra.mxu0 0.0
    %1304 = vmatpush.msra.mxu0 0.0
    %1305 = vmatpush.msra.mxu0 0.0
    %1306 = vmatpush.msra.mxu0 0.0
    %1307 = vmatpush.msra.mxu0 %v1291
    %1308 = vmatpush.msra.mxu0 %v1290
    %1309 = vmatpush.msra.mxu0 %v1289
    %1310 = vmatpush.msra.mxu0 %v1288
    %1311 = vmatmul.f32.gmra.mxu0 %v1293
    %v1312 = vpop.f32.mrf.mxu0
    %v1313 = vadd.f32 0.0, %v1312
    %1314 = vdwg.mxu0
    %v1315 = vld [vmem:[%s8] sm:$0xff]
    %v1316 = vld [vmem:[%s8 + $0x8] sm:$0xff]
    %v1317 = vld [vmem:[%s8 + $0x10] sm:$0xff]
    %v1318 = vld [vmem:[%s8 + $0x18] sm:$0xff]
    %v1319 = vld [vmem:[%s8 + $0x20] sm:$0xff]
    %v1320 = vld [vmem:[%s8 + $0x28] sm:$0xff]
    %v1321 = vld [vmem:[%s8 + $0x30] sm:$0xff]
    %v1322 = vld [vmem:[%s8 + $0x38] sm:$0xff]
    %v1323 = vld [vmem:[#allocation14] sm:$0xff]
    %v1324 = vld [vmem:[#allocation14 + $0x8] sm:$0xff]
    %v1325 = vld [vmem:[#allocation14 + $0x10] sm:$0xff]
    %v1326 = vld [vmem:[#allocation14 + $0x18] sm:$0xff]
    %v1327 = vld [vmem:[%s11] sm:$0x1]
    %v1328 = vld [vmem:[%s12] sm:$0xff]
    %v1329 = vld [vmem:[%s12 + $0x8] sm:$0xff]
    %v1330 = vld [vmem:[%s12 + $0x10] sm:$0xff]
    %v1331 = vld [vmem:[%s12 + $0x18] sm:$0xff]
    %v1332 = vld [vmem:[%s13] sm:$0x1]
    // While loop
    $region82: #{forward_e2e.1} parent=1 // loop_pre_header
      _
    $region83: #{forward_e2e.1} parent=1 // loop_header
      %s1334 = sphi 0, %s1533
      %s1335 = sphi 1, %s1530
      %v1336 = vphi %v1275, %v1500
      %v1337 = vphi %v1269, %v1494
      %p1338 = scmp.lt.s32.totalorder %s1334, 100
      %p1339 = scmp.ne.s32.totalorder %s1335, 2
      %p1340 = pnand %p1338, %p1339
      %p1341 = pneg %p1340
    $region84: #{forward_e2e.1} parent=1 // loop_header_branch
      %1343 = sbr.rel (%p1340) target = $region88
    $region85: #{forward_e2e.1} parent=1 // loop_body
      %s1344 = sshra.s32 %s1335, 3
      %s1345 = sand.u32 %s1335, 7
      %s1346 = sshra.s32 %s1335, 3
      %s1347 = sand.u32 %s1335, 7
      %s1348 = smul.u32 %s1344, 2
      %s1349 = smul.u32 %s1348, 8
      %s1350 = sadd.s32 %s1349, %s1347
      %s1351 = scalar_lea.vmem [#allocation11], %s1350
      %v1352 = vld [vmem:[%s1351] ss:$8 sm:$0x3]
      %1354 = vrot.lane.b32.xlu0 %v1336, 32
      %v1355 = vpop.permute.xlu0 %1354
      %v1356 = vsel %vm157, %v1355, 0
      %1358 = vmatpush.msra.mxu0 0.0
      %1359 = vmatpush.msra.mxu0 0.0
      %1360 = vmatpush.msra.mxu0 0.0
      %1361 = vmatpush.msra.mxu0 0.0
      %1362 = vmatpush.msra.mxu0 0.0
      %1363 = vmatpush.msra.mxu0 0.0
      %1364 = vmatpush.msra.mxu0 0.0
      %1365 = vmatpush.msra.mxu0 0.0
      %1366 = vmatpush.msra.mxu0 0.0
      %1367 = vmatpush.msra.mxu0 0.0
      %1368 = vmatpush.msra.mxu0 0.0
      %1369 = vmatpush.msra.mxu0 0.0
      %1370 = vmatpush.msra.mxu0 %v1321
      %1371 = vmatpush.msra.mxu0 %v1319
      %1372 = vmatpush.msra.mxu0 %v1317
      %1373 = vmatpush.msra.mxu0 %v1315
      %1374 = vmatmul.f32.gmra.mxu0 %v1356
      %v1375 = vpop.f32.mrf.mxu0
      %v1376 = vadd.f32 0.0, %v1375
      %1377 = vdwg.mxu0
      %1378 = vmatpush.msra.mxu0 0.0
      %1379 = vmatpush.msra.mxu0 0.0
      %1380 = vmatpush.msra.mxu0 0.0
      %1381 = vmatpush.msra.mxu0 0.0
      %1382 = vmatpush.msra.mxu0 0.0
      %1383 = vmatpush.msra.mxu0 0.0
      %1384 = vmatpush.msra.mxu0 0.0
      %1385 = vmatpush.msra.mxu0 0.0
      %1386 = vmatpush.msra.mxu0 0.0
      %1387 = vmatpush.msra.mxu0 0.0
      %1388 = vmatpush.msra.mxu0 0.0
      %1389 = vmatpush.msra.mxu0 0.0
      %1390 = vmatpush.msra.mxu0 %v1322
      %1391 = vmatpush.msra.mxu0 %v1320
      %1392 = vmatpush.msra.mxu0 %v1318
      %1393 = vmatpush.msra.mxu0 %v1316
      %1394 = vmatmul.f32.gmra.mxu0 %v1356
      %v1395 = vpop.f32.mrf.mxu0
      %v1396 = vadd.f32 0.0, %v1395
      %1397 = vdwg.mxu0
      %v1399 = vrot.slane %v1352, 1
      %v1401 = vadd.f32 %v1399, %v1396
      %vm1402 = vcmask 57344
      %v1403 = vsel %vm1402, %v1401, -inf
      %1404 = vmax.xlane.f32.xlu0 %v1403
      %v1405 = vpop.xlane.xlu0 %1404
      %v1406 = vsub.f32 %v1401, %v1405
      %v1407 = vmul.f32 %v1406, 1.442695
      %v1408 = vpow.pop %v1407
      %v1409 = vsel %vm1402, %v1408, 0.0
      %1410 = vadd.xlane.f32.xlu0 %v1409
      %v1411 = vpop.xlane.xlu0 %1410
      %v1412 = vrcp.pop %v1411
      %v1413 = vmul.f32 %v1408, %v1412
      %vm1414 = vcmask 64512
      %v1416 = vsel %vm1414, %v1413, 0
      %1418 = vmatpush.msra.mxu0 0.0
      %1419 = vmatpush.msra.mxu0 0.0
      %1420 = vmatpush.msra.mxu0 0.0
      %1421 = vmatpush.msra.mxu0 0.0
      %1422 = vmatpush.msra.mxu0 0.0
      %1423 = vmatpush.msra.mxu0 0.0
      %1424 = vmatpush.msra.mxu0 0.0
      %1425 = vmatpush.msra.mxu0 0.0
      %1426 = vmatpush.msra.mxu0 0.0
      %1427 = vmatpush.msra.mxu0 0.0
      %1428 = vmatpush.msra.mxu0 0.0
      %1429 = vmatpush.msra.mxu0 0.0
      %1430 = vmatpush.msra.mxu0 0.0
      %1431 = vmatpush.msra.mxu0 0.0
      %1432 = vmatpush.msra.mxu0 0.0
      %1433 = vmatpush.msra.mxu0 %v1313
      %1434 = vmatmul.f32.gmra.mxu0 %v1416
      %v1435 = vpop.f32.mrf.mxu0
      %v1436 = vadd.f32 0.0, %v1435
      %1437 = vdwg.mxu0
      %v1438 = vadd.f32 %v1352, %v1436
      %v1439 = vmax.f32 %v1438, 0.0
      %v1441 = vsel %vm157, %v1439, 0
      %1443 = vmatpush.msra.mxu0 0.0
      %1444 = vmatpush.msra.mxu0 0.0
      %1445 = vmatpush.msra.mxu0 0.0
      %1446 = vmatpush.msra.mxu0 0.0
      %1447 = vmatpush.msra.mxu0 0.0
      %1448 = vmatpush.msra.mxu0 0.0
      %1449 = vmatpush.msra.mxu0 0.0
      %1450 = vmatpush.msra.mxu0 0.0
      %1451 = vmatpush.msra.mxu0 0.0
      %1452 = vmatpush.msra.mxu0 0.0
      %1453 = vmatpush.msra.mxu0 0.0
      %1454 = vmatpush.msra.mxu0 0.0
      %1455 = vmatpush.msra.mxu0 %v1326
      %1456 = vmatpush.msra.mxu0 %v1325
      %1457 = vmatpush.msra.mxu0 %v1324
      %1458 = vmatpush.msra.mxu0 %v1323
      %1459 = vmatmul.f32.gmra.mxu0 %v1441
      %v1460 = vpop.f32.mrf.mxu0
      %v1461 = vadd.f32 %v1376, %v1460
      %1462 = vdwg.mxu0
      %v1463 = vadd.f32 %v1461, %v1327
      %v1464 = vxor.u32 %v1463, 2147483648
      %v1465 = vmul.f32 %v1464, 1.442695
      %v1466 = vpow.pop %v1465
      %v1467 = vadd.f32 %v1466, 1.0
      %v1468 = vrcp.pop %v1467
      %v1469 = vmul.f32 %v1467, %v1468
      %v1470 = vsub.f32 1.0, %v1469
      %v1471 = vmul.f32 %v1468, %v1470
      %v1472 = vadd.f32 %v1468, %v1471
      %vm1473 = vweird.f32 %v1467
      %vm1474 = vweird.f32 %v1468
      %vm1475 = vmor %vm1473, %vm1474
      %v1476 = vsel %vm1475, %v1468, %v1472
      %v1477 = vand.u32 2147483647, %v1467
      %vm1478 = vcmp.eq.f32.partialorder %v1477, 8.507059e+37
      %v1479 = vand.u32 %v1467, 2147483648
      %v1480 = vor.u32 1.1754944e-38, %v1479
      %v1481 = vsel %vm1478, %v1480, %v1476
      %v1482 = vmul.f32 1.0, %v1481
      %v1483 = vtanh.pop %v1463
      %v1484 = vmul.f32 %v1482, %v1337
      %1486 = vrot.lane.b32.xlu0 %v1483, 64
      %v1487 = vpop.permute.xlu0 %1486
      %v1489 = vmul.f32 %v1482, %v1487
      %1491 = vrot.lane.b32.xlu0 %v1489, 32
      %v1492 = vpop.permute.xlu0 %1491
      %v1494 = vadd.f32 %v1484, %v1492
      %v1495 = vtanh.pop %v1494
      %1497 = vrot.lane.b32.xlu0 %v1495, 64
      %v1498 = vpop.permute.xlu0 %1497
      %v1500 = vmul.f32 %v1482, %v1498
      %1502 = vrot.lane.b32.xlu0 %v1500, 32
      %v1503 = vpop.permute.xlu0 %1502
      %v1504 = vsel %vm157, %v1503, 0
      %1506 = vmatpush.msra.mxu0 0.0
      %1507 = vmatpush.msra.mxu0 0.0
      %1508 = vmatpush.msra.mxu0 0.0
      %1509 = vmatpush.msra.mxu0 0.0
      %1510 = vmatpush.msra.mxu0 0.0
      %1511 = vmatpush.msra.mxu0 0.0
      %1512 = vmatpush.msra.mxu0 0.0
      %1513 = vmatpush.msra.mxu0 0.0
      %1514 = vmatpush.msra.mxu0 0.0
      %1515 = vmatpush.msra.mxu0 0.0
      %1516 = vmatpush.msra.mxu0 0.0
      %1517 = vmatpush.msra.mxu0 0.0
      %1518 = vmatpush.msra.mxu0 %v1331
      %1519 = vmatpush.msra.mxu0 %v1330
      %1520 = vmatpush.msra.mxu0 %v1329
      %1521 = vmatpush.msra.mxu0 %v1328
      %1522 = vmatmul.f32.gmra.mxu0 %v1504
      %v1523 = vpop.f32.mrf.mxu0
      %v1524 = vadd.f32 %v1332, %v1523
      %1525 = vdwg.mxu0
      %vm1526 = vcmask 122880
      %v1527 = vsel %vm1526, %v1524, -inf
      %1528 = vmax.index.xlane.f32.xlu0 %v1527
      %v1529 = vpop.xlane.xlu0 %1528
      %s1530 = vtos %v1529
      %s1531 = scalar_lea.smem [#allocation16], %s1334
      %1532 = sst [smem:[%s1531]] %s1530
      %s1533 = sadd.s32 %s1334, 1
    $region86: #{forward_e2e.1} parent=1 // loop_footer
      _
    $region87: #{forward_e2e.1} parent=1 // loop_footer_branch
      %1333 = sbr.rel target = $region83
    $region88: #{forward_e2e.1} parent=1 // loop_exit
      _
    // While loop
    $region89: #{forward_e2e.1} parent=1 // loop_pre_header
      _
    $region90: #{forward_e2e.1} parent=1 // loop_header
      %s1535 = sphi %s1334, %s1537
      %p1536 = scmp.ge.s32.totalorder %s1535, 100
    $region91: #{forward_e2e.1} parent=1 // loop_header_branch
      %1539 = sbr.rel (%p1536) target = $region95
    $region92: #{forward_e2e.1} parent=1 // loop_body
      %s1540 = scalar_lea.smem [#allocation16], %s1535
      %1541 = sst [smem:[%s1540]] 0
    $region93: #{forward_e2e.1} parent=1 // loop_footer
      %s1537 = sadd.s32 %s1535, 1
    $region94: #{forward_e2e.1} parent=1 // loop_footer_branch
      %1534 = sbr.rel target = $region90
    $region95: #{forward_e2e.1} parent=1 // loop_exit
      _
    // Predicated region
    $region96: #{forward_e2e.1} parent=1 // pred_check
      _
    $region97: #{forward_e2e.1} parent=1 // pred_check_branch
      %1543 = sbr.rel (0) target = $region99
    $region98: #{forward_e2e.1} parent=1 // pred_region
      %1545 = vsyncadd [#allocation7], 0
      %s1547 = sshll.u32 %s14, 4
      %s1548 = int_to_ptr.vmem [resolvable:$true] %s1547
      %1550 = dma.smem_to_vmem [#allocation16], 16, %s1548, [#allocation7]
    $region99: #{forward_e2e.1} parent=1 // pred_fallthru
      _
    // Predicated region
    $region100: #{forward_e2e.1} parent=1 // pred_check
      _
    $region101: #{forward_e2e.1} parent=1 // pred_check_branch
      %1552 = sbr.rel (0) target = $region103
    $region102: #{forward_e2e.1} parent=1 // pred_region
      %1554 = vsyncadd [#allocation6], 0
      %s1556 = sshll.u32 [#allocation17], 4
      %s1557 = int_to_ptr.vmem [resolvable:$true] %s1556
      %s1558 = sshll.u32 %s15, 4
      %s1559 = int_to_ptr.hbm [resolvable:$true] %s1558
      %1561 = dma.vmem_to_hbm [thread:$0]  %s1557, 128, %s1559, [#allocation6]
    $region103: #{forward_e2e.1} parent=1 // pred_fallthru
      _
    // Predicated region
    $region104: #{forward_e2e.1} parent=1 // pred_check
      _
    $region105: #{forward_e2e.1} parent=1 // pred_check_branch
      %1563 = sbr.rel (0) target = $region107
    $region106: #{forward_e2e.1} parent=1 // pred_region
      %1565 = vsyncadd [#allocation19], 0
      %s1567 = sshll.u32 [#allocation18], 4
      %s1568 = int_to_ptr.vmem [resolvable:$true] %s1567
      %s1569 = sshll.u32 %s16, 4
      %s1570 = int_to_ptr.hbm [resolvable:$true] %s1569
      %1572 = dma.vmem_to_hbm [thread:$0]  %s1568, 16, %s1570, [#allocation19]
    $region107: #{forward_e2e.1} parent=1 // pred_fallthru
      _
    // Predicated region
    $region108: #{forward_e2e.1} parent=1 // pred_check
      _
    $region109: #{forward_e2e.1} parent=1 // pred_check_branch
      %1574 = sbr.rel (0) target = $region111
    $region110: #{forward_e2e.1} parent=1 // pred_region
      %1576 = vsyncadd [#allocation19], 0
      %s1578 = sshll.u32 [#allocation20], 4
      %s1579 = int_to_ptr.vmem [resolvable:$true] %s1578
      %s1580 = sshll.u32 %s17, 4
      %s1581 = int_to_ptr.hbm [resolvable:$true] %s1580
      %1583 = dma.vmem_to_hbm [thread:$0]  %s1579, 16, %s1581, [#allocation19]
    $region111: #{forward_e2e.1} parent=1 // pred_fallthru
      _
    // Predicated region
    $region112: #{forward_e2e.1} parent=1 // pred_check
      _
    $region113: #{forward_e2e.1} parent=1 // pred_check_branch
      %1585 = sbr.rel (0) target = $region115
    $region114: #{forward_e2e.1} parent=1 // pred_region
      %1587 = dma.done [#allocation7], 16
    $region115: #{forward_e2e.1} parent=1 // pred_fallthru
      _
    // Predicated region
    $region116: #{forward_e2e.1} parent=1 // pred_check
      _
    $region117: #{forward_e2e.1} parent=1 // pred_check_branch
      %1589 = sbr.rel (0) target = $region119
    $region118: #{forward_e2e.1} parent=1 // pred_region
      %1591 = dma.done [#allocation6], 128
    $region119: #{forward_e2e.1} parent=1 // pred_fallthru
      _
    // Predicated region
    $region120: #{forward_e2e.1} parent=1 // pred_check
      _
    $region121: #{forward_e2e.1} parent=1 // pred_check_branch
      %1593 = sbr.rel (0) target = $region123
    $region122: #{forward_e2e.1} parent=1 // pred_region
      %1595 = dma.done [#allocation19], 16
    $region123: #{forward_e2e.1} parent=1 // pred_fallthru
      _
    // Predicated region
    $region124: #{forward_e2e.1} parent=1 // pred_check
      _
    $region125: #{forward_e2e.1} parent=1 // pred_check_branch
      %1597 = sbr.rel (0) target = $region127
    $region126: #{forward_e2e.1} parent=1 // pred_region
      %1599 = dma.done [#allocation19], 16
    $region127: #{forward_e2e.1} parent=1 // pred_fallthru
      _
    %1600 = sfence
    %1601 = vsyncpa [#allocation5], 1
    %1602 = vsyncpa [#allocation9], 1
    %1603 = vsyncpa [#allocation12], 1
    %1604 = vsyncpa [#allocation15], 1
    %1605 = vsyncpa [#allocation6], 1
    %1606 = vsyncpa [#allocation19], 1
    %1607 = vsyncpa [#allocation7], 1

</llo_original>
